<compile_context>
chip_gen: v6e
topology: v6e:2x2x1
jax: 0.10.0
libtpu: 0.0.40
codegen_flags: <defaults>
</compile_context>

<pallas_src>
import functools
import math

import numpy as np
import jax
import jax.numpy as jnp
from jax import lax
from jax.experimental import pallas as pl
from jax.experimental.pallas import tpu as pltpu


# ----------------------------------------------------------------------------
# One fused kernel: encoder over all folded batches/timesteps of the grid step,
# then optional L2-normalize + bias-free prototypes Linear.
# ----------------------------------------------------------------------------
def fused_kernel(bbox_ref, we_ref, w32_ref, w2_ref, bias_ref, mask_ref,
                 pool_ref, bsel_ref, diag_ref, wwide_ref, out_ref,
                 *, d, hidden, f, t, p_pad, normalize):
    x = bbox_ref[0]                                    # (Tg, 4) f32, Tg = bg*t*o

    # packed bias row: [be | b1 | b2 | bp]
    be = bias_ref[:, 0:d]
    b1 = bias_ref[:, d:d + hidden]
    b2 = bias_ref[:, d + hidden:2 * d + hidden]
    bp = bias_ref[:, 2 * d + hidden:2 * d + hidden + f]

    # ---- token embedding: (Tg, 4) @ (4, d) + (1, d) --------------------------
    h = jnp.dot(x, we_ref[...], preferred_element_type=jnp.float32) + be

    # ---- single-head self-attention, block-diagonal over all sequences ------
    # Wab = [Wq Wk^T / sqrt(d) | Wv Wo] pre-fused offline -> one projection push.
    h16 = h.astype(jnp.bfloat16)
    hab = jnp.dot(h16, w32_ref[:, 0:2 * d],
                  preferred_element_type=jnp.float32)                      # (Tg, 2d)
    ha = hab[:, 0:d].astype(jnp.bfloat16)
    hv = hab[:, d:2 * d].astype(jnp.bfloat16)
    scores = lax.dot_general(ha, h16, (((1,), (1,)), ((), ())),
                             preferred_element_type=jnp.float32)           # (Tg, Tg)
    scores = scores + mask_ref[...]        # additive 0 / -1e30 block-diag mask
    m = jnp.max(scores, axis=-1, keepdims=True)
    e = jnp.exp(scores - m)
    denom = jnp.sum(e, axis=-1, keepdims=True)
    attn = e * pl.reciprocal(denom, approx=True)        # EUP, not VALU divide
    h = h + jnp.dot(attn.astype(jnp.bfloat16), hv,
                    preferred_element_type=jnp.float32)

    # ---- MLP block (residual) ------------------------------------------------
    h16 = h.astype(jnp.bfloat16)
    m1 = jnp.maximum(
        jnp.dot(h16, w32_ref[:, 2 * d:2 * d + hidden],
                preferred_element_type=jnp.float32) + b1, 0.0)
    h = h + jnp.dot(m1.astype(jnp.bfloat16), w2_ref[...],
                    preferred_element_type=jnp.float32) + b2

    # ---- mean-pool each (batch, timestep)'s o tokens (1/o folded into pool) --
    pooled = jnp.dot(pool_ref[...], h.astype(jnp.bfloat16),
                     preferred_element_type=jnp.float32)                   # (tg, d)
    feat = jnp.dot(pooled.astype(jnp.bfloat16),
                   w32_ref[:, 2 * d + hidden:2 * d + hidden + f],
                   preferred_element_type=jnp.float32) + bp                # (tg, f)

    # ---- prototypes head, no flatten loop ------------------------------------
    # proto[b, p] = sum_j feat[b*t + j, :] @ Wproto_j[:, p]
    wide = jnp.dot(feat.astype(jnp.bfloat16), wwide_ref[...],
                   preferred_element_type=jnp.float32)                     # (tg, t*p_pad)
    masked = wide * diag_ref[...]                  # keep block (row mod t) only
    prow = jnp.dot(bsel_ref[...], masked,
                   preferred_element_type=jnp.float32)                     # (bg, t*p_pad)
    proto = prow[:, 0:p_pad]
    for j in range(1, t):                          # 128-aligned lane-block adds
        proto = proto + prow[:, j * p_pad:(j + 1) * p_pad]                 # (bg, p_pad)

    if normalize:
        # F.normalize(dim=1): scale after the (linear, bias-free) prototypes.
        sq = jnp.dot(bsel_ref[...], feat * feat,
                     preferred_element_type=jnp.float32)                   # (bg, f)
        ssq = jnp.sum(sq, axis=1, keepdims=True)                           # (bg, 1)
        inv = lax.rsqrt(jnp.maximum(ssq, jnp.float32(1e-24)))
        proto = proto * inv

    out_ref[0] = proto


# ----------------------------------------------------------------------------
# Module wrapper (glue mirrors the torch forward exactly)
# ----------------------------------------------------------------------------
def bbox_motion_prior_forward(images, bbox, params, normalize=True,
                              batch_block=None):
    # `images` is accepted but unused — the reference forward never reads it.
    del images
    b, t, o, d4 = bbox.shape
    d = params["we"].shape[1]
    hidden = params["w2"].shape[0]
    f = params["bias_row"].shape[1] - 2 * d - hidden
    P = params["nmb_prototypes"]
    p_pad = params["wwide"].shape[1] // t

    # batch_block = batches folded into one grid step.  Default: all of them
    # (single grid step — best on single-TC v5e/v6e).  On v7x pass
    # batch_block = ceil(b / 2) to give each TensorCore one step.
    if batch_block is None:
        batch_block = b
    assert b % batch_block == 0
    num_blocks = b // batch_block
    Tg = batch_block * t * o          # tokens per grid step
    tg = batch_block * t              # (batch, timestep) rows per grid step

    bbox_r = bbox.reshape(num_blocks, Tg, d4).astype(jnp.float32)

    # -- grid-invariant constants, built host-side, DMA'd once ----------------
    seq = np.arange(Tg) // o                                   # global sequence id
    mask_bias = np.where(seq[:, None] == seq[None, :],
                         0.0, -1e30).astype(np.float32)        # (Tg, Tg)
    pool = ((np.arange(tg)[:, None] == seq[None, :])
            .astype(np.float32) / o)                           # (tg, Tg), 1/o folded
    bsel = (np.arange(batch_block)[:, None] ==
            (np.arange(tg)[None, :] // t)).astype(np.float32)  # (bg, tg)
    diag = ((np.arange(tg) % t)[:, None] ==
            (np.arange(t * p_pad) // p_pad)[None, :]).astype(np.float32)  # (tg, t*p_pad)

    weights = [params["we"], params["w32"], params["w2"], params["bias_row"],
               jnp.asarray(mask_bias),
               jnp.asarray(pool, dtype=jnp.bfloat16),
               jnp.asarray(bsel),
               jnp.asarray(diag),
               params["wwide"]]

    def full_spec(a):
        nd = a.ndim
        return pl.BlockSpec(a.shape, lambda i, _nd=nd: (0,) * _nd)

    kern = functools.partial(fused_kernel, d=d, hidden=hidden, f=f, t=t,
                             p_pad=p_pad, normalize=normalize)

    # advisory cost so XLA overlaps surrounding ops around the custom call
    flops = 2 * num_blocks * (
        Tg * 4 * d + Tg * d * 2 * d + 2 * Tg * Tg * d
        + Tg * d * hidden + Tg * hidden * d + tg * Tg * d + tg * d * f
        + tg * f * t * p_pad + batch_block * tg * t * p_pad
        + batch_block * tg * f)
    bytes_accessed = int(
        bbox_r.size * 4
        + sum(int(np.prod(w.shape)) * w.dtype.itemsize for w in weights)
        + b * p_pad * 4)
    cost = pl.CostEstimate(flops=int(flops),
                           transcendentals=int(num_blocks * Tg * Tg),
                           bytes_accessed=bytes_accessed)

    out = pl.pallas_call(
        kern,
        out_shape=jax.ShapeDtypeStruct((num_blocks, batch_block, p_pad),
                                       jnp.float32),
        grid=(num_blocks,),
        in_specs=[pl.BlockSpec((1, Tg, d4), lambda i: (i, 0, 0))]
                 + [full_spec(w) for w in weights],
        out_specs=pl.BlockSpec((1, batch_block, p_pad), lambda i: (i, 0, 0)),
        compiler_params=pltpu.CompilerParams(
            dimension_semantics=("parallel",)),
        cost_estimate=cost,
    )(bbox_r, *weights)

    return out.reshape(b, p_pad)[:, :P]        # drop lane padding


def init_params(key, *, d_model, f, hidden, t, nmb_prototypes):
    ks = jax.random.split(key, 13)
    sc = 0.1
    we = sc * jax.random.normal(ks[0], (4, d_model), jnp.float32)
    wq = sc * jax.random.normal(ks[1], (d_model, d_model), jnp.float32)
    wk = sc * jax.random.normal(ks[2], (d_model, d_model), jnp.float32)
    wv = sc * jax.random.normal(ks[3], (d_model, d_model), jnp.float32)
    wo = sc * jax.random.normal(ks[4], (d_model, d_model), jnp.float32)
    w1 = sc * jax.random.normal(ks[5], (d_model, hidden), jnp.float32)
    w2 = sc * jax.random.normal(ks[6], (hidden, d_model), jnp.float32)
    wp = sc * jax.random.normal(ks[7], (d_model, f), jnp.float32)
    be = 0.01 * jax.random.normal(ks[8], (1, d_model), jnp.float32)
    b1 = 0.01 * jax.random.normal(ks[9], (1, hidden), jnp.float32)
    b2 = 0.01 * jax.random.normal(ks[10], (1, d_model), jnp.float32)
    bp = 0.01 * jax.random.normal(ks[11], (1, f), jnp.float32)
    # nn.Linear(out_size=t*f, nmb_prototypes, bias=False): weight (P, t*f),
    # applied as x @ W.T -> store the transpose.
    w_proto_T = sc * jax.random.normal(ks[12], (t * f, nmb_prototypes),
                                       jnp.float32)

    p_pad = ((nmb_prototypes + 127) // 128) * 128
    # Fused attention weights (exact by associativity), softmax scale folded in:
    #   Wa = (Wq Wk^T) / sqrt(d),  Wb = Wv Wo.
    wa = (wq @ wk.T) / math.sqrt(d_model)
    wb = wv @ wo
    # Single (d, .) bf16 weight slab: [Wa | Wb | W1 | Wp]
    w32 = jnp.concatenate([wa, wb, w1, wp], axis=1).astype(jnp.bfloat16)
    # Single bias row: [be | b1 | b2 | bp]
    bias_row = jnp.concatenate([be, b1, b2, bp], axis=1)
    # Prototypes weight laid out per-timestep along lanes: block j (columns
    # [j*p_pad, j*p_pad+P)) holds Wproto_j = w_proto_T[j*f:(j+1)*f, :].
    w3 = w_proto_T.reshape(t, f, nmb_prototypes)
    w3 = jnp.pad(w3, ((0, 0), (0, 0), (0, p_pad - nmb_prototypes)))
    wwide = jnp.transpose(w3, (1, 0, 2)).reshape(f, t * p_pad).astype(jnp.bfloat16)

    return {
        "we": we,
        "w32": w32,
        "w2": w2.astype(jnp.bfloat16),
        "bias_row": bias_row,
        "wwide": wwide,
        "nmb_prototypes": nmb_prototypes,
    }


if __name__ == "__main__":
    b, t, o = 2, 8, 4
    d_model, f, hidden, P = 32, 32, 64, 16   # prototypes in_size = t*f = 256

    key = jax.random.PRNGKey(0)
    k_bbox, k_img = jax.random.split(key)
    bbox = jax.random.uniform(k_bbox, (b, t, o, 4), dtype=jnp.float32)
    images = jax.random.normal(k_img, (b, t, 4, 16, 16), dtype=jnp.float32)  # unused

    params = init_params(jax.random.PRNGKey(42), d_model=d_model, f=f,
                         hidden=hidden, t=t, nmb_prototypes=P)

    out = bbox_motion_prior_forward(images, bbox, params, normalize=True)
    jax.block_until_ready(out)
    assert out.shape == (b, P), out.shape
    assert bool(jnp.all(jnp.isfinite(out)))
    print("KERNEL_OK")
</pallas_src>

<mosaic_0001>
module attributes {stable_mosaic.version = 11 : i64} {
  func.func @fused_kernel(%arg0: i32, %arg1: memref<1x64x4xf32, #tpu.memory_space<vmem>>, %arg2: memref<4x32xf32, #tpu.memory_space<vmem>>, %arg3: memref<32x160xbf16, #tpu.memory_space<vmem>>, %arg4: memref<64x32xbf16, #tpu.memory_space<vmem>>, %arg5: memref<1x160xf32, #tpu.memory_space<vmem>>, %arg6: memref<64x64xf32, #tpu.memory_space<vmem>>, %arg7: memref<16x64xbf16, #tpu.memory_space<vmem>>, %arg8: memref<2x16xf32, #tpu.memory_space<vmem>>, %arg9: memref<16x1024xf32, #tpu.memory_space<vmem>>, %arg10: memref<32x1024xbf16, #tpu.memory_space<vmem>>, %arg11: memref<1x2x128xf32, #tpu.memory_space<vmem>>) attributes {dimension_semantics = [#tpu.dimension_semantics<parallel>], iteration_bounds = array<i64: 1>, scalar_prefetch = 0 : i64, scratch_operands = 0 : i64, tpu.core_type = #tpu.core_type<tc>, window_params = [{transform_indices = @transform_0, window_bounds = array<i64: 1, 64, 4>}, {pipeline_mode = #tpu.pipeline_mode<synchronous>, transform_indices = @transform_1, window_bounds = array<i64: 4, 32>}, {pipeline_mode = #tpu.pipeline_mode<synchronous>, transform_indices = @transform_2, window_bounds = array<i64: 32, 160>}, {pipeline_mode = #tpu.pipeline_mode<synchronous>, transform_indices = @transform_3, window_bounds = array<i64: 64, 32>}, {pipeline_mode = #tpu.pipeline_mode<synchronous>, transform_indices = @transform_4, window_bounds = array<i64: 1, 160>}, {pipeline_mode = #tpu.pipeline_mode<synchronous>, transform_indices = @transform_5, window_bounds = array<i64: 64, 64>}, {pipeline_mode = #tpu.pipeline_mode<synchronous>, transform_indices = @transform_6, window_bounds = array<i64: 16, 64>}, {pipeline_mode = #tpu.pipeline_mode<synchronous>, transform_indices = @transform_7, window_bounds = array<i64: 2, 16>}, {pipeline_mode = #tpu.pipeline_mode<synchronous>, transform_indices = @transform_8, window_bounds = array<i64: 16, 1024>}, {pipeline_mode = #tpu.pipeline_mode<synchronous>, transform_indices = @transform_9, window_bounds = array<i64: 32, 1024>}, {transform_indices = @transform_10, window_bounds = array<i64: 1, 2, 128>}]} {
    %c0 = arith.constant 0 : index
    %c0_0 = arith.constant 0 : index
    %c0_1 = arith.constant 0 : index
    %0 = vector.load %arg1[%c0, %c0_0, %c0_1] : memref<1x64x4xf32, #tpu.memory_space<vmem>>, vector<1x64x4xf32>
    %1 = vector.shape_cast %0 : vector<1x64x4xf32> to vector<64x4xf32>
    %c0_2 = arith.constant 0 : index
    %c0_3 = arith.constant 0 : index
    %2 = vector.load %arg5[%c0_2, %c0_3] : memref<1x160xf32, #tpu.memory_space<vmem>>, vector<1x32xf32>
    %c0_4 = arith.constant 0 : index
    %c32 = arith.constant 32 : index
    %3 = vector.load %arg5[%c0_4, %c32] : memref<1x160xf32, #tpu.memory_space<vmem>>, vector<1x64xf32>
    %c0_5 = arith.constant 0 : index
    %c96 = arith.constant 96 : index
    %4 = vector.load %arg5[%c0_5, %c96] : memref<1x160xf32, #tpu.memory_space<vmem>>, vector<1x32xf32>
    %c0_6 = arith.constant 0 : index
    %c128 = arith.constant 128 : index
    %5 = vector.load %arg5[%c0_6, %c128] : memref<1x160xf32, #tpu.memory_space<vmem>>, vector<1x32xf32>
    %c0_7 = arith.constant 0 : index
    %c0_8 = arith.constant 0 : index
    %6 = vector.load %arg2[%c0_7, %c0_8] : memref<4x32xf32, #tpu.memory_space<vmem>>, vector<4x32xf32>
    %cst = arith.constant dense<0.000000e+00> : vector<64x32xf32>
    %7 = tpu.matmul %1, %6, %cst {dimension_numbers = #tpu.dot_dimension_numbers<[1], [0], [0], [1], [0, 0, 1, 1], [], []>} : vector<64x4xf32>, vector<4x32xf32>, vector<64x32xf32> -> vector<64x32xf32>
    %8 = vector.broadcast %2 : vector<1x32xf32> to vector<64x32xf32>
    %9 = arith.addf %7, %8 : vector<64x32xf32>
    %10 = arith.truncf %9 : vector<64x32xf32> to vector<64x32xbf16>
    %c0_9 = arith.constant 0 : index
    %c0_10 = arith.constant 0 : index
    %11 = vector.load %arg3[%c0_9, %c0_10] : memref<32x160xbf16, #tpu.memory_space<vmem>>, vector<32x64xbf16>
    %cst_11 = arith.constant dense<0.000000e+00> : vector<64x64xf32>
    %12 = tpu.matmul %10, %11, %cst_11 {dimension_numbers = #tpu.dot_dimension_numbers<[1], [0], [0], [1], [0, 0, 1, 1], [], []>} : vector<64x32xbf16>, vector<32x64xbf16>, vector<64x64xf32> -> vector<64x64xf32>
    %13 = vector.extract_strided_slice %12 {offsets = [0, 0], sizes = [64, 32], strides = [1, 1]} : vector<64x64xf32> to vector<64x32xf32>
    %14 = arith.truncf %13 : vector<64x32xf32> to vector<64x32xbf16>
    %15 = vector.extract_strided_slice %12 {offsets = [0, 32], sizes = [64, 32], strides = [1, 1]} : vector<64x64xf32> to vector<64x32xf32>
    %16 = arith.truncf %15 : vector<64x32xf32> to vector<64x32xbf16>
    %cst_12 = arith.constant dense<0.000000e+00> : vector<64x64xf32>
    %17 = tpu.matmul %14, %10, %cst_12 {dimension_numbers = #tpu.dot_dimension_numbers<[1], [1], [0], [0], [0, 0, 1, 0], [], []>} : vector<64x32xbf16>, vector<64x32xbf16>, vector<64x64xf32> -> vector<64x64xf32>
    %c0_13 = arith.constant 0 : index
    %c0_14 = arith.constant 0 : index
    %18 = vector.load %arg6[%c0_13, %c0_14] : memref<64x64xf32, #tpu.memory_space<vmem>>, vector<64x64xf32>
    %19 = arith.addf %17, %18 : vector<64x64xf32>
    %cst_15 = arith.constant dense<0xFF800000> : vector<64xf32>
    %20 = vector.multi_reduction <maximumf>, %19, %cst_15 [1] : vector<64x64xf32> to vector<64xf32>
    %21 = vector.shape_cast %20 : vector<64xf32> to vector<64x1xf32>
    %22 = vector.broadcast %21 : vector<64x1xf32> to vector<64x64xf32>
    %23 = arith.subf %19, %22 : vector<64x64xf32>
    %24 = math.exp %23 : vector<64x64xf32>
    %cst_16 = arith.constant dense<0.000000e+00> : vector<64xf32>
    %25 = vector.multi_reduction <add>, %24, %cst_16 [1] : vector<64x64xf32> to vector<64xf32>
    %26 = vector.shape_cast %25 : vector<64xf32> to vector<64x1xf32>
    %27 = tpu.reciprocal %26 {approx = true} : vector<64x1xf32> -> vector<64x1xf32>
    %28 = vector.broadcast %27 : vector<64x1xf32> to vector<64x64xf32>
    %29 = arith.mulf %24, %28 : vector<64x64xf32>
    %30 = arith.truncf %29 : vector<64x64xf32> to vector<64x64xbf16>
    %cst_17 = arith.constant dense<0.000000e+00> : vector<64x32xf32>
    %31 = tpu.matmul %30, %16, %cst_17 {dimension_numbers = #tpu.dot_dimension_numbers<[1], [0], [0], [1], [0, 0, 1, 1], [], []>} : vector<64x64xbf16>, vector<64x32xbf16>, vector<64x32xf32> -> vector<64x32xf32>
    %32 = arith.addf %9, %31 : vector<64x32xf32>
    %33 = arith.truncf %32 : vector<64x32xf32> to vector<64x32xbf16>
    %c0_18 = arith.constant 0 : index
    %c64 = arith.constant 64 : index
    %34 = vector.load %arg3[%c0_18, %c64] : memref<32x160xbf16, #tpu.memory_space<vmem>>, vector<32x64xbf16>
    %cst_19 = arith.constant dense<0.000000e+00> : vector<64x64xf32>
    %35 = tpu.matmul %33, %34, %cst_19 {dimension_numbers = #tpu.dot_dimension_numbers<[1], [0], [0], [1], [0, 0, 1, 1], [], []>} : vector<64x32xbf16>, vector<32x64xbf16>, vector<64x64xf32> -> vector<64x64xf32>
    %36 = vector.broadcast %3 : vector<1x64xf32> to vector<64x64xf32>
    %37 = arith.addf %35, %36 : vector<64x64xf32>
    %cst_20 = arith.constant 0.000000e+00 : f32
    %38 = vector.broadcast %cst_20 : f32 to vector<64x64xf32>
    %39 = arith.maximumf %37, %38 : vector<64x64xf32>
    %40 = arith.truncf %39 : vector<64x64xf32> to vector<64x64xbf16>
    %c0_21 = arith.constant 0 : index
    %c0_22 = arith.constant 0 : index
    %41 = vector.load %arg4[%c0_21, %c0_22] : memref<64x32xbf16, #tpu.memory_space<vmem>>, vector<64x32xbf16>
    %cst_23 = arith.constant dense<0.000000e+00> : vector<64x32xf32>
    %42 = tpu.matmul %40, %41, %cst_23 {dimension_numbers = #tpu.dot_dimension_numbers<[1], [0], [0], [1], [0, 0, 1, 1], [], []>} : vector<64x64xbf16>, vector<64x32xbf16>, vector<64x32xf32> -> vector<64x32xf32>
    %43 = arith.addf %32, %42 : vector<64x32xf32>
    %44 = vector.broadcast %4 : vector<1x32xf32> to vector<64x32xf32>
    %45 = arith.addf %43, %44 : vector<64x32xf32>
    %c0_24 = arith.constant 0 : index
    %c0_25 = arith.constant 0 : index
    %46 = vector.load %arg7[%c0_24, %c0_25] : memref<16x64xbf16, #tpu.memory_space<vmem>>, vector<16x64xbf16>
    %47 = arith.truncf %45 : vector<64x32xf32> to vector<64x32xbf16>
    %cst_26 = arith.constant dense<0.000000e+00> : vector<16x32xf32>
    %48 = tpu.matmul %46, %47, %cst_26 {dimension_numbers = #tpu.dot_dimension_numbers<[1], [0], [0], [1], [0, 0, 1, 1], [], []>} : vector<16x64xbf16>, vector<64x32xbf16>, vector<16x32xf32> -> vector<16x32xf32>
    %49 = arith.truncf %48 : vector<16x32xf32> to vector<16x32xbf16>
    %c0_27 = arith.constant 0 : index
    %c128_28 = arith.constant 128 : index
    %50 = vector.load %arg3[%c0_27, %c128_28] : memref<32x160xbf16, #tpu.memory_space<vmem>>, vector<32x32xbf16>
    %cst_29 = arith.constant dense<0.000000e+00> : vector<16x32xf32>
    %51 = tpu.matmul %49, %50, %cst_29 {dimension_numbers = #tpu.dot_dimension_numbers<[1], [0], [0], [1], [0, 0, 1, 1], [], []>} : vector<16x32xbf16>, vector<32x32xbf16>, vector<16x32xf32> -> vector<16x32xf32>
    %52 = vector.broadcast %5 : vector<1x32xf32> to vector<16x32xf32>
    %53 = arith.addf %51, %52 : vector<16x32xf32>
    %54 = arith.truncf %53 : vector<16x32xf32> to vector<16x32xbf16>
    %c0_30 = arith.constant 0 : index
    %c0_31 = arith.constant 0 : index
    %55 = vector.load %arg10[%c0_30, %c0_31] : memref<32x1024xbf16, #tpu.memory_space<vmem>>, vector<32x1024xbf16>
    %cst_32 = arith.constant dense<0.000000e+00> : vector<16x1024xf32>
    %56 = tpu.matmul %54, %55, %cst_32 {dimension_numbers = #tpu.dot_dimension_numbers<[1], [0], [0], [1], [0, 0, 1, 1], [], []>} : vector<16x32xbf16>, vector<32x1024xbf16>, vector<16x1024xf32> -> vector<16x1024xf32>
    %c0_33 = arith.constant 0 : index
    %c0_34 = arith.constant 0 : index
    %57 = vector.load %arg9[%c0_33, %c0_34] : memref<16x1024xf32, #tpu.memory_space<vmem>>, vector<16x1024xf32>
    %58 = arith.mulf %56, %57 : vector<16x1024xf32>
    %c0_35 = arith.constant 0 : index
    %c0_36 = arith.constant 0 : index
    %59 = vector.load %arg8[%c0_35, %c0_36] : memref<2x16xf32, #tpu.memory_space<vmem>>, vector<2x16xf32>
    %cst_37 = arith.constant dense<0.000000e+00> : vector<2x1024xf32>
    %60 = tpu.matmul %59, %58, %cst_37 {dimension_numbers = #tpu.dot_dimension_numbers<[1], [0], [0], [1], [0, 0, 1, 1], [], []>} : vector<2x16xf32>, vector<16x1024xf32>, vector<2x1024xf32> -> vector<2x1024xf32>
    %61 = vector.extract_strided_slice %60 {offsets = [0, 0], sizes = [2, 128], strides = [1, 1]} : vector<2x1024xf32> to vector<2x128xf32>
    %62 = vector.extract_strided_slice %60 {offsets = [0, 128], sizes = [2, 128], strides = [1, 1]} : vector<2x1024xf32> to vector<2x128xf32>
    %63 = arith.addf %61, %62 : vector<2x128xf32>
    %64 = vector.extract_strided_slice %60 {offsets = [0, 256], sizes = [2, 128], strides = [1, 1]} : vector<2x1024xf32> to vector<2x128xf32>
    %65 = arith.addf %63, %64 : vector<2x128xf32>
    %66 = vector.extract_strided_slice %60 {offsets = [0, 384], sizes = [2, 128], strides = [1, 1]} : vector<2x1024xf32> to vector<2x128xf32>
    %67 = arith.addf %65, %66 : vector<2x128xf32>
    %68 = vector.extract_strided_slice %60 {offsets = [0, 512], sizes = [2, 128], strides = [1, 1]} : vector<2x1024xf32> to vector<2x128xf32>
    %69 = arith.addf %67, %68 : vector<2x128xf32>
    %70 = vector.extract_strided_slice %60 {offsets = [0, 640], sizes = [2, 128], strides = [1, 1]} : vector<2x1024xf32> to vector<2x128xf32>
    %71 = arith.addf %69, %70 : vector<2x128xf32>
    %72 = vector.extract_strided_slice %60 {offsets = [0, 768], sizes = [2, 128], strides = [1, 1]} : vector<2x1024xf32> to vector<2x128xf32>
    %73 = arith.addf %71, %72 : vector<2x128xf32>
    %74 = vector.extract_strided_slice %60 {offsets = [0, 896], sizes = [2, 128], strides = [1, 1]} : vector<2x1024xf32> to vector<2x128xf32>
    %75 = arith.addf %73, %74 : vector<2x128xf32>
    %c0_38 = arith.constant 0 : index
    %c0_39 = arith.constant 0 : index
    %76 = vector.load %arg8[%c0_38, %c0_39] : memref<2x16xf32, #tpu.memory_space<vmem>>, vector<2x16xf32>
    %77 = arith.mulf %53, %53 : vector<16x32xf32>
    %cst_40 = arith.constant dense<0.000000e+00> : vector<2x32xf32>
    %78 = tpu.matmul %76, %77, %cst_40 {dimension_numbers = #tpu.dot_dimension_numbers<[1], [0], [0], [1], [0, 0, 1, 1], [], []>} : vector<2x16xf32>, vector<16x32xf32>, vector<2x32xf32> -> vector<2x32xf32>
    %cst_41 = arith.constant dense<0.000000e+00> : vector<2xf32>
    %79 = vector.multi_reduction <add>, %78, %cst_41 [1] : vector<2x32xf32> to vector<2xf32>
    %80 = vector.shape_cast %79 : vector<2xf32> to vector<2x1xf32>
    %cst_42 = arith.constant 1.000000e-24 : f32
    %81 = vector.broadcast %cst_42 : f32 to vector<2x1xf32>
    %82 = arith.maximumf %80, %81 : vector<2x1xf32>
    %83 = math.rsqrt %82 : vector<2x1xf32>
    %84 = vector.broadcast %83 : vector<2x1xf32> to vector<2x128xf32>
    %85 = arith.mulf %75, %84 : vector<2x128xf32>
    %c0_43 = arith.constant 0 : index
    %c0_44 = arith.constant 0 : index
    %c0_45 = arith.constant 0 : index
    %86 = vector.load %arg11[%c0_43, %c0_44, %c0_45] : memref<1x2x128xf32, #tpu.memory_space<vmem>>, vector<1x2x128xf32>
    %87 = vector.shape_cast %86 : vector<1x2x128xf32> to vector<2x128xf32>
    %88 = vector.shape_cast %85 : vector<2x128xf32> to vector<1x2x128xf32>
    tpu.vector_store %arg11[%c0_43, %c0_44, %c0_45], %88 {strides = array<i32>} : memref<1x2x128xf32, #tpu.memory_space<vmem>>, vector<1x2x128xf32>,
    return
  }
  func.func @transform_0(%arg0: i32) -> (i32, i32, i32) {
    %c0_i32 = arith.constant 0 : i32
    %c0_i32_0 = arith.constant 0 : i32
    %c0_i32_1 = arith.constant 0 : i32
    return %arg0, %c0_i32, %c0_i32_0 : i32, i32, i32
  }
  func.func @transform_1(%arg0: i32) -> (i32, i32) {
    %c0_i32 = arith.constant 0 : i32
    %c0_i32_0 = arith.constant 0 : i32
    %c0_i32_1 = arith.constant 0 : i32
    return %c0_i32, %c0_i32_0 : i32, i32
  }
  func.func @transform_2(%arg0: i32) -> (i32, i32) {
    %c0_i32 = arith.constant 0 : i32
    %c0_i32_0 = arith.constant 0 : i32
    %c0_i32_1 = arith.constant 0 : i32
    return %c0_i32, %c0_i32_0 : i32, i32
  }
  func.func @transform_3(%arg0: i32) -> (i32, i32) {
    %c0_i32 = arith.constant 0 : i32
    %c0_i32_0 = arith.constant 0 : i32
    %c0_i32_1 = arith.constant 0 : i32
    return %c0_i32, %c0_i32_0 : i32, i32
  }
  func.func @transform_4(%arg0: i32) -> (i32, i32) {
    %c0_i32 = arith.constant 0 : i32
    %c0_i32_0 = arith.constant 0 : i32
    %c0_i32_1 = arith.constant 0 : i32
    return %c0_i32, %c0_i32_0 : i32, i32
  }
  func.func @transform_5(%arg0: i32) -> (i32, i32) {
    %c0_i32 = arith.constant 0 : i32
    %c0_i32_0 = arith.constant 0 : i32
    %c0_i32_1 = arith.constant 0 : i32
    return %c0_i32, %c0_i32_0 : i32, i32
  }
  func.func @transform_6(%arg0: i32) -> (i32, i32) {
    %c0_i32 = arith.constant 0 : i32
    %c0_i32_0 = arith.constant 0 : i32
    %c0_i32_1 = arith.constant 0 : i32
    return %c0_i32, %c0_i32_0 : i32, i32
  }
  func.func @transform_7(%arg0: i32) -> (i32, i32) {
    %c0_i32 = arith.constant 0 : i32
    %c0_i32_0 = arith.constant 0 : i32
    %c0_i32_1 = arith.constant 0 : i32
    return %c0_i32, %c0_i32_0 : i32, i32
  }
  func.func @transform_8(%arg0: i32) -> (i32, i32) {
    %c0_i32 = arith.constant 0 : i32
    %c0_i32_0 = arith.constant 0 : i32
    %c0_i32_1 = arith.constant 0 : i32
    return %c0_i32, %c0_i32_0 : i32, i32
  }
  func.func @transform_9(%arg0: i32) -> (i32, i32) {
    %c0_i32 = arith.constant 0 : i32
    %c0_i32_0 = arith.constant 0 : i32
    %c0_i32_1 = arith.constant 0 : i32
    return %c0_i32, %c0_i32_0 : i32, i32
  }
  func.func @transform_10(%arg0: i32) -> (i32, i32, i32) {
    %c0_i32 = arith.constant 0 : i32
    %c0_i32_0 = arith.constant 0 : i32
    %c0_i32_1 = arith.constant 0 : i32
    return %arg0, %c0_i32, %c0_i32_0 : i32, i32, i32
  }
}

</mosaic_0001>

<llo_original>
// kernel: tpu_custom_call.1
$region0: #{tpu_custom_call.1}
  #allocation0 [shape = 'u32[]', space=smem, size = 0x4, offset = 0x4, fixed_abs, tag = 'smem constant byte address 0x4 - core index']
  #allocation1 [shape = 'u32[144,128]{1,0:T(1,128)}', space=vmem, size = 0x12000, scoped, tag = 'internal scratch']
  %s0 = inlined_call_operand.vmem [shape: f32[1,64,4], index: 0, kind: input, shape index: {}]
  %s1 = inlined_call_operand.hbm [shape: f32[4,32], index: 1, kind: input, shape index: {}]
  %s2 = inlined_call_operand.hbm [shape: bf16[32,160], index: 2, kind: input, shape index: {}]
  %s3 = inlined_call_operand.vmem [shape: bf16[64,32], index: 3, kind: input, shape index: {}]
  %s4 = inlined_call_operand.vmem [shape: f32[1,160], index: 4, kind: input, shape index: {}]
  %s5 = inlined_call_operand.hbm [shape: f32[64,64], index: 5, kind: input, shape index: {}]
  %s6 = inlined_call_operand.hbm [shape: bf16[16,64], index: 6, kind: input, shape index: {}]
  %s7 = inlined_call_operand.hbm [shape: f32[2,16], index: 7, kind: input, shape index: {}]
  %s8 = inlined_call_operand.vmem [shape: f32[16,1024], index: 8, kind: input, shape index: {}]
  %s9 = inlined_call_operand.hbm [shape: bf16[32,1024], index: 9, kind: input, shape index: {}]
  %s10 = inlined_call_operand.hbm [shape: f32[1,2,128], index: 10, kind: output, shape index: {}]
  %s11 = sld [smem:[#allocation0]]
  $region74: #{tpu_custom_call.1} parent=0
    _
  %s13 = ssub.s32 1, %s11
  %s14 = scalar_select 0, %s13, %s11
  $region1: #{tpu_custom_call.1} parent=0
    #allocation2 [shape = 'u8[2048]{0}', space=vmem, size = 0x800, scoped, tag = 'input window, operand 1, single buffered']
    #allocation3 [shape = 's32[1]{0}', space=sflag, size = 0x4, scoped, tag = 'scoped memory for tpu_custom_call.1']
    #allocation4 [shape = 's32[1]{0}', space=sflag, size = 0x4, scoped, tag = 'scoped memory for tpu_custom_call.1']
    #allocation5 [shape = 'u8[16384]{0}', space=vmem, size = 0x4000, scoped, tag = 'input window, operand 2, single buffered']
    #allocation6 [shape = 's32[1]{0}', space=sflag, size = 0x4, scoped, tag = 'scoped memory for tpu_custom_call.1']
    #allocation7 [shape = 'u8[32768]{0}', space=vmem, size = 0x8000, scoped, tag = 'input window, operand 5, single buffered']
    #allocation8 [shape = 'u8[4096]{0}', space=vmem, size = 0x1000, scoped, tag = 'input window, operand 6, single buffered']
    #allocation9 [shape = 's32[1]{0}', space=sflag, size = 0x4, scoped, tag = 'scoped memory for tpu_custom_call.1']
    #allocation10 [shape = 'u8[1024]{0}', space=vmem, size = 0x400, scoped, tag = 'input window, operand 7, single buffered']
    #allocation11 [shape = 'u8[65536]{0}', space=vmem, size = 0x10000, scoped, tag = 'input window, operand 9, single buffered']
    #allocation12 [shape = 's32[1]{0}', space=sflag, size = 0x4, scoped, tag = 'scoped memory for tpu_custom_call.1']
    #allocation13 [shape = 'u8[1024]{0}', space=vmem, size = 0x400, scoped, tag = 'output window, operand 0, single buffered']
    %15 = vsyncpa [#allocation3], 0
    %16 = vsyncpa [#allocation6], 0
    %17 = vsyncpa [#allocation9], 0
    %18 = vsyncpa [#allocation12], 0
    %19 = vsyncpa [#allocation4], 0
    // Predicated region
    $region2: #{tpu_custom_call.1} parent=1 // pred_check
      _
    $region3: #{tpu_custom_call.1} parent=1 // pred_check_branch
      %21 = sbr.rel (0) target = $region5
    $region4: #{tpu_custom_call.1} parent=1 // pred_region
      _
    $region5: #{tpu_custom_call.1} parent=1 // pred_fallthru
      _
    // Predicated region
    $region6: #{tpu_custom_call.1} parent=1 // pred_check
      _
    $region7: #{tpu_custom_call.1} parent=1 // pred_check_branch
      %23 = sbr.rel (0) target = $region9
    $region8: #{tpu_custom_call.1} parent=1 // pred_region
      %s25 = ssub.s32 64, 64
      %26 = vsyncadd [#allocation3], %s25
      %s28 = sshll.u32 [#allocation2], 4
      %s29 = int_to_ptr.vmem [resolvable:$true] %s28
      %31 = dma.hbm_to_vmem [thread:$0]  %s1, 64, %s29, [#allocation3]
    $region9: #{tpu_custom_call.1} parent=1 // pred_fallthru
      _
    // Predicated region
    $region10: #{tpu_custom_call.1} parent=1 // pred_check
      _
    $region11: #{tpu_custom_call.1} parent=1 // pred_check_branch
      %33 = sbr.rel (0) target = $region13
    $region12: #{tpu_custom_call.1} parent=1 // pred_region
      %s35 = ssub.s32 512, 512
      %36 = vsyncadd [#allocation6], %s35
      %s37 = sshll.u32 [#allocation5], 4
      %s38 = int_to_ptr.vmem [resolvable:$true] %s37
      %43 = dma.hbm_to_vmem [thread:$0]  %s2, 512, %s38, [#allocation6], 128, 128, 8
    $region13: #{tpu_custom_call.1} parent=1 // pred_fallthru
      _
    // Predicated region
    $region14: #{tpu_custom_call.1} parent=1 // pred_check
      _
    $region15: #{tpu_custom_call.1} parent=1 // pred_check_branch
      %45 = sbr.rel (0) target = $region17
    $region16: #{tpu_custom_call.1} parent=1 // pred_region
      _
    $region17: #{tpu_custom_call.1} parent=1 // pred_fallthru
      _
    // Predicated region
    $region18: #{tpu_custom_call.1} parent=1 // pred_check
      _
    $region19: #{tpu_custom_call.1} parent=1 // pred_check_branch
      %47 = sbr.rel (0) target = $region21
    $region20: #{tpu_custom_call.1} parent=1 // pred_region
      _
    $region21: #{tpu_custom_call.1} parent=1 // pred_fallthru
      _
    // Predicated region
    $region22: #{tpu_custom_call.1} parent=1 // pred_check
      _
    $region23: #{tpu_custom_call.1} parent=1 // pred_check_branch
      %49 = sbr.rel (0) target = $region25
    $region24: #{tpu_custom_call.1} parent=1 // pred_region
      %s51 = ssub.s32 1024, 1024
      %52 = vsyncadd [#allocation6], %s51
      %s53 = sshll.u32 [#allocation7], 4
      %s54 = int_to_ptr.vmem [resolvable:$true] %s53
      %59 = dma.hbm_to_vmem [thread:$0]  %s5, 1024, %s54, [#allocation6], 128, 128, 8
    $region25: #{tpu_custom_call.1} parent=1 // pred_fallthru
      _
    // Predicated region
    $region26: #{tpu_custom_call.1} parent=1 // pred_check
      _
    $region27: #{tpu_custom_call.1} parent=1 // pred_check_branch
      %61 = sbr.rel (0) target = $region29
    $region28: #{tpu_custom_call.1} parent=1 // pred_region
      %s63 = ssub.s32 128, 128
      %64 = vsyncadd [#allocation9], %s63
      %s65 = sshll.u32 [#allocation8], 4
      %s66 = int_to_ptr.vmem [resolvable:$true] %s65
      %71 = dma.hbm_to_vmem [thread:$0]  %s6, 128, %s66, [#allocation9], 64, 64, 4
    $region29: #{tpu_custom_call.1} parent=1 // pred_fallthru
      _
    // Predicated region
    $region30: #{tpu_custom_call.1} parent=1 // pred_check
      _
    $region31: #{tpu_custom_call.1} parent=1 // pred_check_branch
      %73 = sbr.rel (0) target = $region33
    $region32: #{tpu_custom_call.1} parent=1 // pred_region
      %s75 = ssub.s32 32, 32
      %76 = vsyncadd [#allocation9], %s75
      %s78 = sshll.u32 [#allocation10], 4
      %s79 = int_to_ptr.vmem [resolvable:$true] %s78
      %81 = dma.hbm_to_vmem [thread:$0]  %s7, 32, %s79, [#allocation9]
    $region33: #{tpu_custom_call.1} parent=1 // pred_fallthru
      _
    // Predicated region
    $region34: #{tpu_custom_call.1} parent=1 // pred_check
      _
    $region35: #{tpu_custom_call.1} parent=1 // pred_check_branch
      %83 = sbr.rel (0) target = $region37
    $region36: #{tpu_custom_call.1} parent=1 // pred_region
      _
    $region37: #{tpu_custom_call.1} parent=1 // pred_fallthru
      _
    // Predicated region
    $region38: #{tpu_custom_call.1} parent=1 // pred_check
      _
    $region39: #{tpu_custom_call.1} parent=1 // pred_check_branch
      %85 = sbr.rel (0) target = $region41
    $region40: #{tpu_custom_call.1} parent=1 // pred_region
      %s87 = ssub.s32 2048, 2048
      %88 = vsyncadd [#allocation12], %s87
      %s89 = sshll.u32 [#allocation11], 4
      %s90 = int_to_ptr.vmem [resolvable:$true] %s89
      %95 = dma.hbm_to_vmem [thread:$0]  %s9, 2048, %s90, [#allocation12], 512, 512, 32
    $region41: #{tpu_custom_call.1} parent=1 // pred_fallthru
      _
    // Predicated region
    $region42: #{tpu_custom_call.1} parent=1 // pred_check
      _
    $region43: #{tpu_custom_call.1} parent=1 // pred_check_branch
      %97 = sbr.rel (0) target = $region45
    $region44: #{tpu_custom_call.1} parent=1 // pred_region
      %98 = dma.done [#allocation3], 64
    $region45: #{tpu_custom_call.1} parent=1 // pred_fallthru
      _
    // Predicated region
    $region46: #{tpu_custom_call.1} parent=1 // pred_check
      _
    $region47: #{tpu_custom_call.1} parent=1 // pred_check_branch
      %100 = sbr.rel (0) target = $region49
    $region48: #{tpu_custom_call.1} parent=1 // pred_region
      %101 = dma.done [#allocation6], 512
    $region49: #{tpu_custom_call.1} parent=1 // pred_fallthru
      _
    // Predicated region
    $region50: #{tpu_custom_call.1} parent=1 // pred_check
      _
    $region51: #{tpu_custom_call.1} parent=1 // pred_check_branch
      %103 = sbr.rel (0) target = $region53
    $region52: #{tpu_custom_call.1} parent=1 // pred_region
      %104 = dma.done [#allocation6], 1024
    $region53: #{tpu_custom_call.1} parent=1 // pred_fallthru
      _
    // Predicated region
    $region54: #{tpu_custom_call.1} parent=1 // pred_check
      _
    $region55: #{tpu_custom_call.1} parent=1 // pred_check_branch
      %106 = sbr.rel (0) target = $region57
    $region56: #{tpu_custom_call.1} parent=1 // pred_region
      %107 = dma.done [#allocation9], 128
    $region57: #{tpu_custom_call.1} parent=1 // pred_fallthru
      _
    // Predicated region
    $region58: #{tpu_custom_call.1} parent=1 // pred_check
      _
    $region59: #{tpu_custom_call.1} parent=1 // pred_check_branch
      %109 = sbr.rel (0) target = $region61
    $region60: #{tpu_custom_call.1} parent=1 // pred_region
      %110 = dma.done [#allocation9], 32
    $region61: #{tpu_custom_call.1} parent=1 // pred_fallthru
      _
    // Predicated region
    $region62: #{tpu_custom_call.1} parent=1 // pred_check
      _
    $region63: #{tpu_custom_call.1} parent=1 // pred_check_branch
      %112 = sbr.rel (0) target = $region65
    $region64: #{tpu_custom_call.1} parent=1 // pred_region
      %113 = dma.done [#allocation12], 2048
    $region65: #{tpu_custom_call.1} parent=1 // pred_fallthru
      _
    %v115 = vld [vmem:[%s0] sm:$0xff]
    %v116 = vld [vmem:[%s0 + $0x8] sm:$0xff]
    %v117 = vld [vmem:[%s0 + $0x10] sm:$0xff]
    %v118 = vld [vmem:[%s0 + $0x18] sm:$0xff]
    %v119 = vld [vmem:[%s0 + $0x20] sm:$0xff]
    %v120 = vld [vmem:[%s0 + $0x28] sm:$0xff]
    %v121 = vld [vmem:[%s0 + $0x30] sm:$0xff]
    %v122 = vld [vmem:[%s0 + $0x38] sm:$0xff]
    %v123 = vld [vmem:[%s4] sm:$0x1]
    %v124 = vld [vmem:[%s4 + $0x1] sm:$0x1]
    %v125 = vld [vmem:[#allocation2] sm:$0xf]
    %v127 = vlaneseq
    %v128 = vshrl.u32 %v127, 7
    %v129 = vsub.s32 0, %v128
    %v130 = vrot.slane %v123, %v129
    %vm132 = vcmask 31744
    %v134 = vsel %vm132, %v115, 0
    %v137 = vsel %vm132, %v116, 0
    %v140 = vsel %vm132, %v117, 0
    %v143 = vsel %vm132, %v118, 0
    %v146 = vsel %vm132, %v119, 0
    %v149 = vsel %vm132, %v120, 0
    %v152 = vsel %vm132, %v121, 0
    %v155 = vsel %vm132, %v122, 0
    %vm157 = vcmask 1043456
    %v159 = vsel %vm157, %v125, 0
    %161 = vmatprep.subr.mxu0 0.0
    %162 = vmatpush1.msra.mxu0 0.0
    %163 = vmatprep.subr.mxu0 0.0
    %164 = vmatpush1.msra.mxu0 0.0
    %165 = vmatprep.subr.mxu0 0.0
    %166 = vmatpush1.msra.mxu0 0.0
    %167 = vmatprep.subr.mxu0 0.0
    %168 = vmatpush1.msra.mxu0 0.0
    %169 = vmatprep.subr.mxu0 0.0
    %170 = vmatpush1.msra.mxu0 0.0
    %171 = vmatprep.subr.mxu0 0.0
    %172 = vmatpush1.msra.mxu0 0.0
    %173 = vmatprep.subr.mxu0 0.0
    %174 = vmatpush1.msra.mxu0 0.0
    %175 = vmatprep.subr.mxu0 0.0
    %176 = vmatpush1.msra.mxu0 0.0
    %177 = vmatprep.subr.mxu0 0.0
    %178 = vmatpush1.msra.mxu0 0.0
    %179 = vmatprep.subr.mxu0 0.0
    %180 = vmatpush1.msra.mxu0 0.0
    %181 = vmatprep.subr.mxu0 0.0
    %182 = vmatpush1.msra.mxu0 0.0
    %183 = vmatprep.subr.mxu0 0.0
    %184 = vmatpush1.msra.mxu0 0.0
    %185 = vmatprep.subr.mxu0 0.0
    %186 = vmatpush1.msra.mxu0 0.0
    %187 = vmatprep.subr.mxu0 0.0
    %188 = vmatpush1.msra.mxu0 0.0
    %189 = vmatprep.subr.mxu0 0.0
    %190 = vmatpush1.msra.mxu0 0.0
    %191 = vmatprep.subr.mxu0 0.0
    %192 = vmatpush1.msra.mxu0 %v159
    %193 = vmatprep.subr.mxu0 0.0
    %194 = vmatpush2.msra.mxu0 0.0
    %195 = vmatprep.subr.mxu0 0.0
    %196 = vmatpush2.msra.mxu0 0.0
    %197 = vmatprep.subr.mxu0 0.0
    %198 = vmatpush2.msra.mxu0 0.0
    %199 = vmatprep.subr.mxu0 0.0
    %200 = vmatpush2.msra.mxu0 0.0
    %201 = vmatprep.subr.mxu0 0.0
    %202 = vmatpush2.msra.mxu0 0.0
    %203 = vmatprep.subr.mxu0 0.0
    %204 = vmatpush2.msra.mxu0 0.0
    %205 = vmatprep.subr.mxu0 0.0
    %206 = vmatpush2.msra.mxu0 0.0
    %207 = vmatprep.subr.mxu0 0.0
    %208 = vmatpush2.msra.mxu0 0.0
    %209 = vmatprep.subr.mxu0 0.0
    %210 = vmatpush2.msra.mxu0 0.0
    %211 = vmatprep.subr.mxu0 0.0
    %212 = vmatpush2.msra.mxu0 0.0
    %213 = vmatprep.subr.mxu0 0.0
    %214 = vmatpush2.msra.mxu0 0.0
    %215 = vmatprep.subr.mxu0 0.0
    %216 = vmatpush2.msra.mxu0 0.0
    %217 = vmatprep.subr.mxu0 0.0
    %218 = vmatpush2.msra.mxu0 0.0
    %219 = vmatprep.subr.mxu0 0.0
    %220 = vmatpush2.msra.mxu0 0.0
    %221 = vmatprep.subr.mxu0 0.0
    %222 = vmatpush2.msra.mxu0 0.0
    %223 = vmatprep.subr.mxu0 0.0
    %224 = vmatpush2.msra.mxu0 0.0
    %225 = vmatprep.mubr.f32.mxu0 0.0
    %226 = vmatmul.mubr.f32.gmra.mxu0 %v134
    %v227 = vpop.f32.mrf.mxu0
    %v228 = vadd.f32 %v130, %v227
    %v229 = vpop.f32.mrf.mxu0
    %230 = vmatprep.mubr.f32.mxu0 0.0
    %231 = vmatmul.mubr.f32.gmra.mxu0 %v137
    %v232 = vpop.f32.mrf.mxu0
    %v233 = vadd.f32 %v130, %v232
    %v234 = vpop.f32.mrf.mxu0
    %235 = vmatprep.mubr.f32.mxu0 0.0
    %236 = vmatmul.mubr.f32.gmra.mxu0 %v140
    %v237 = vpop.f32.mrf.mxu0
    %v238 = vadd.f32 %v130, %v237
    %v239 = vpop.f32.mrf.mxu0
    %240 = vmatprep.mubr.f32.mxu0 0.0
    %241 = vmatmul.mubr.f32.gmra.mxu0 %v143
    %v242 = vpop.f32.mrf.mxu0
    %v243 = vadd.f32 %v130, %v242
    %v244 = vpop.f32.mrf.mxu0
    %245 = vmatprep.mubr.f32.mxu0 0.0
    %246 = vmatmul.mubr.f32.gmra.mxu0 %v146
    %v247 = vpop.f32.mrf.mxu0
    %v248 = vadd.f32 %v130, %v247
    %v249 = vpop.f32.mrf.mxu0
    %250 = vmatprep.mubr.f32.mxu0 0.0
    %251 = vmatmul.mubr.f32.gmra.mxu0 %v149
    %v252 = vpop.f32.mrf.mxu0
    %v253 = vadd.f32 %v130, %v252
    %v254 = vpop.f32.mrf.mxu0
    %255 = vmatprep.mubr.f32.mxu0 0.0
    %256 = vmatmul.mubr.f32.gmra.mxu0 %v152
    %v257 = vpop.f32.mrf.mxu0
    %v258 = vadd.f32 %v130, %v257
    %v259 = vpop.f32.mrf.mxu0
    %260 = vmatprep.mubr.f32.mxu0 0.0
    %261 = vmatmul.mubr.f32.gmra.mxu0 %v155
    %v262 = vpop.f32.mrf.mxu0
    %v263 = vadd.f32 %v130, %v262
    %v264 = vpop.f32.mrf.mxu0
    %265 = vdwg.mxu0
    %v266 = vpack.c.bf16 %v233, %v228
    %v267 = vpack.c.bf16 %v243, %v238
    %v268 = vpack.c.bf16 %v253, %v248
    %v269 = vpack.c.bf16 %v263, %v258
    %v270 = vld [vmem:[#allocation5] sm:$0xf]
    %v271 = vld [vmem:[#allocation5 + $0x8] sm:$0xf]
    %v272 = vld [vmem:[#allocation5 + $0x10] sm:$0xf]
    %v273 = vld [vmem:[#allocation5 + $0x18] sm:$0xf]
    %v278 = vunpack.c.l.b16 %v270
    %v279 = vunpack.c.l.b16 %v271
    %v280 = vunpack.c.l.b16 %v272
    %v281 = vunpack.c.l.b16 %v273
    %v282 = vpack.c.b16 %v279, %v278
    %v283 = vpack.c.b16 %v281, %v280
    %vm286 = vcmask 261120
    %v288 = vsel %vm286, %v266, 0
    %v291 = vsel %vm286, %v267, 0
    %v294 = vsel %vm286, %v268, 0
    %v297 = vsel %vm286, %v269, 0
    %299 = vmatprep.subr.bf16.mxu0 0
    %300 = vmatpush1.bf16.msra.mxu0 0
    %301 = vmatprep.subr.bf16.mxu0 0
    %302 = vmatpush1.bf16.msra.mxu0 0
    %303 = vmatprep.subr.bf16.mxu0 0
    %304 = vmatpush1.bf16.msra.mxu0 0
    %305 = vmatprep.subr.bf16.mxu0 0
    %306 = vmatpush1.bf16.msra.mxu0 0
    %307 = vmatprep.subr.bf16.mxu0 0
    %308 = vmatpush1.bf16.msra.mxu0 0
    %309 = vmatprep.subr.bf16.mxu0 0
    %310 = vmatpush1.bf16.msra.mxu0 0
    %311 = vmatprep.subr.bf16.mxu0 0
    %312 = vmatpush1.bf16.msra.mxu0 %v283
    %313 = vmatprep.subr.bf16.mxu0 0
    %314 = vmatpush1.bf16.msra.mxu0 %v282
    %315 = vmatprep.subr.bf16.mxu0 0
    %316 = vmatpush2.bf16.msra.mxu0 0
    %317 = vmatprep.subr.bf16.mxu0 0
    %318 = vmatpush2.bf16.msra.mxu0 0
    %319 = vmatprep.subr.bf16.mxu0 0
    %320 = vmatpush2.bf16.msra.mxu0 0
    %321 = vmatprep.subr.bf16.mxu0 0
    %322 = vmatpush2.bf16.msra.mxu0 0
    %323 = vmatprep.subr.bf16.mxu0 0
    %324 = vmatpush2.bf16.msra.mxu0 0
    %325 = vmatprep.subr.bf16.mxu0 0
    %326 = vmatpush2.bf16.msra.mxu0 0
    %327 = vmatprep.subr.bf16.mxu0 0
    %328 = vmatpush2.bf16.msra.mxu0 0
    %329 = vmatprep.subr.bf16.mxu0 0
    %330 = vmatpush2.bf16.msra.mxu0 0
    %331 = vmatprep.mubr.bf16.mxu0 0
    %332 = vmatmul.mubr.bf16.gmra.mxu0 %v288
    %v333 = vpop.f32.mrf.mxu0
    %v334 = vadd.f32 0.0, %v333
    %v335 = vpop.f32.mrf.mxu0
    %v336 = vpop.f32.mrf.mxu0
    %v337 = vadd.f32 0.0, %v336
    %v338 = vpop.f32.mrf.mxu0
    %339 = vmatprep.mubr.bf16.mxu0 0
    %340 = vmatmul.mubr.bf16.gmra.mxu0 %v291
    %v341 = vpop.f32.mrf.mxu0
    %v342 = vadd.f32 0.0, %v341
    %v343 = vpop.f32.mrf.mxu0
    %v344 = vpop.f32.mrf.mxu0
    %v345 = vadd.f32 0.0, %v344
    %v346 = vpop.f32.mrf.mxu0
    %347 = vmatprep.mubr.bf16.mxu0 0
    %348 = vmatmul.mubr.bf16.gmra.mxu0 %v294
    %v349 = vpop.f32.mrf.mxu0
    %v350 = vadd.f32 0.0, %v349
    %v351 = vpop.f32.mrf.mxu0
    %v352 = vpop.f32.mrf.mxu0
    %v353 = vadd.f32 0.0, %v352
    %v354 = vpop.f32.mrf.mxu0
    %355 = vmatprep.mubr.bf16.mxu0 0
    %356 = vmatmul.mubr.bf16.gmra.mxu0 %v297
    %v357 = vpop.f32.mrf.mxu0
    %v358 = vadd.f32 0.0, %v357
    %v359 = vpop.f32.mrf.mxu0
    %v360 = vpop.f32.mrf.mxu0
    %v361 = vadd.f32 0.0, %v360
    %v362 = vpop.f32.mrf.mxu0
    %363 = vdwg.mxu0
    %v364 = vpack.c.bf16 %v337, %v334
    %v365 = vpack.c.bf16 %v345, %v342
    %v366 = vpack.c.bf16 %v353, %v350
    %v367 = vpack.c.bf16 %v361, %v358
    %v368 = vld [vmem:[#allocation7] sm:$0xff]
    %v369 = vld [vmem:[#allocation7 + $0x8] sm:$0xff]
    %v370 = vld [vmem:[#allocation7 + $0x10] sm:$0xff]
    %v371 = vld [vmem:[#allocation7 + $0x18] sm:$0xff]
    %v372 = vld [vmem:[#allocation7 + $0x20] sm:$0xff]
    %v373 = vld [vmem:[#allocation7 + $0x28] sm:$0xff]
    %v374 = vld [vmem:[#allocation7 + $0x30] sm:$0xff]
    %v375 = vld [vmem:[#allocation7 + $0x38] sm:$0xff]
    %v377 = vsel %vm286, %v364, 0
    %v380 = vsel %vm286, %v365, 0
    %v383 = vsel %vm286, %v366, 0
    %v386 = vsel %vm286, %v367, 0
    %388 = vmatprep.subr.bf16.mxu0 0
    %389 = vmatpush1.bf16.xpose.msra.mxu0 0
    %390 = vmatprep.subr.bf16.mxu0 0
    %391 = vmatpush1.bf16.xpose.msra.mxu0 0
    %392 = vmatprep.subr.bf16.mxu0 0
    %393 = vmatpush1.bf16.xpose.msra.mxu0 0
    %394 = vmatprep.subr.bf16.mxu0 0
    %395 = vmatpush1.bf16.xpose.msra.mxu0 0
    %396 = vmatprep.subr.bf16.mxu0 0
    %397 = vmatpush1.bf16.xpose.msra.mxu0 %v297
    %398 = vmatprep.subr.bf16.mxu0 0
    %399 = vmatpush1.bf16.xpose.msra.mxu0 %v294
    %400 = vmatprep.subr.bf16.mxu0 0
    %401 = vmatpush1.bf16.xpose.msra.mxu0 %v291
    %402 = vmatprep.subr.bf16.mxu0 0
    %403 = vmatpush1.bf16.xpose.msra.mxu0 %v288
    %404 = vmatprep.subr.bf16.mxu0 0
    %405 = vmatpush2.bf16.xpose.msra.mxu0 0
    %406 = vmatprep.subr.bf16.mxu0 0
    %407 = vmatpush2.bf16.xpose.msra.mxu0 0
    %408 = vmatprep.subr.bf16.mxu0 0
    %409 = vmatpush2.bf16.xpose.msra.mxu0 0
    %410 = vmatprep.subr.bf16.mxu0 0
    %411 = vmatpush2.bf16.xpose.msra.mxu0 0
    %412 = vmatprep.subr.bf16.mxu0 0
    %413 = vmatpush2.bf16.xpose.msra.mxu0 0
    %414 = vmatprep.subr.bf16.mxu0 0
    %415 = vmatpush2.bf16.xpose.msra.mxu0 0
    %416 = vmatprep.subr.bf16.mxu0 0
    %417 = vmatpush2.bf16.xpose.msra.mxu0 0
    %418 = vmatprep.subr.bf16.mxu0 0
    %419 = vmatpush2.bf16.xpose.msra.mxu0 0
    %420 = vmatprep.mubr.bf16.mxu0 0
    %421 = vmatmul.mubr.bf16.gmra.mxu0 %v377
    %v422 = vpop.f32.mrf.mxu0
    %v423 = vadd.f32 %v368, %v422
    %v424 = vpop.f32.mrf.mxu0
    %v425 = vpop.f32.mrf.mxu0
    %v426 = vadd.f32 %v369, %v425
    %v427 = vpop.f32.mrf.mxu0
    %428 = vmatprep.mubr.bf16.mxu0 0
    %429 = vmatmul.mubr.bf16.gmra.mxu0 %v380
    %v430 = vpop.f32.mrf.mxu0
    %v431 = vadd.f32 %v370, %v430
    %v432 = vpop.f32.mrf.mxu0
    %v433 = vpop.f32.mrf.mxu0
    %v434 = vadd.f32 %v371, %v433
    %v435 = vpop.f32.mrf.mxu0
    %436 = vmatprep.mubr.bf16.mxu0 0
    %437 = vmatmul.mubr.bf16.gmra.mxu0 %v383
    %v438 = vpop.f32.mrf.mxu0
    %v439 = vadd.f32 %v372, %v438
    %v440 = vpop.f32.mrf.mxu0
    %v441 = vpop.f32.mrf.mxu0
    %v442 = vadd.f32 %v373, %v441
    %v443 = vpop.f32.mrf.mxu0
    %444 = vmatprep.mubr.bf16.mxu0 0
    %445 = vmatmul.mubr.bf16.gmra.mxu0 %v386
    %v446 = vpop.f32.mrf.mxu0
    %v447 = vadd.f32 %v374, %v446
    %v448 = vpop.f32.mrf.mxu0
    %v449 = vpop.f32.mrf.mxu0
    %v450 = vadd.f32 %v375, %v449
    %v451 = vpop.f32.mrf.mxu0
    %452 = vdwg.mxu0
    %vm453 = vcmask 523264
    %v454 = vsel %vm453, %v423, -inf
    %455 = vmax.xlane.f32.xlu0 %v454
    %v456 = vpop.xlane.xlu0 %455
    %v457 = vsel %vm453, %v426, -inf
    %458 = vmax.xlane.f32.xlu0 %v457
    %v459 = vpop.xlane.xlu0 %458
    %v460 = vsel %vm453, %v431, -inf
    %461 = vmax.xlane.f32.xlu0 %v460
    %v462 = vpop.xlane.xlu0 %461
    %v463 = vsel %vm453, %v434, -inf
    %464 = vmax.xlane.f32.xlu0 %v463
    %v465 = vpop.xlane.xlu0 %464
    %v466 = vsel %vm453, %v439, -inf
    %467 = vmax.xlane.f32.xlu0 %v466
    %v468 = vpop.xlane.xlu0 %467
    %v469 = vsel %vm453, %v442, -inf
    %470 = vmax.xlane.f32.xlu0 %v469
    %v471 = vpop.xlane.xlu0 %470
    %v472 = vsel %vm453, %v447, -inf
    %473 = vmax.xlane.f32.xlu0 %v472
    %v474 = vpop.xlane.xlu0 %473
    %v475 = vsel %vm453, %v450, -inf
    %476 = vmax.xlane.f32.xlu0 %v475
    %v477 = vpop.xlane.xlu0 %476
    %v478 = vsub.f32 %v423, %v456
    %v479 = vsub.f32 %v426, %v459
    %v480 = vsub.f32 %v431, %v462
    %v481 = vsub.f32 %v434, %v465
    %v482 = vsub.f32 %v439, %v468
    %v483 = vsub.f32 %v442, %v471
    %v484 = vsub.f32 %v447, %v474
    %v485 = vsub.f32 %v450, %v477
    %v486 = vmul.f32 %v478, 1.442695
    %v487 = vpow.pop %v486
    %v488 = vmul.f32 %v479, 1.442695
    %v489 = vpow.pop %v488
    %v490 = vmul.f32 %v480, 1.442695
    %v491 = vpow.pop %v490
    %v492 = vmul.f32 %v481, 1.442695
    %v493 = vpow.pop %v492
    %v494 = vmul.f32 %v482, 1.442695
    %v495 = vpow.pop %v494
    %v496 = vmul.f32 %v483, 1.442695
    %v497 = vpow.pop %v496
    %v498 = vmul.f32 %v484, 1.442695
    %v499 = vpow.pop %v498
    %v500 = vmul.f32 %v485, 1.442695
    %v501 = vpow.pop %v500
    %v502 = vsel %vm453, %v487, 0.0
    %503 = vadd.xlane.f32.xlu0 %v502
    %v504 = vpop.xlane.xlu0 %503
    %v505 = vsel %vm453, %v489, 0.0
    %506 = vadd.xlane.f32.xlu0 %v505
    %v507 = vpop.xlane.xlu0 %506
    %v508 = vsel %vm453, %v491, 0.0
    %509 = vadd.xlane.f32.xlu0 %v508
    %v510 = vpop.xlane.xlu0 %509
    %v511 = vsel %vm453, %v493, 0.0
    %512 = vadd.xlane.f32.xlu0 %v511
    %v513 = vpop.xlane.xlu0 %512
    %v514 = vsel %vm453, %v495, 0.0
    %515 = vadd.xlane.f32.xlu0 %v514
    %v516 = vpop.xlane.xlu0 %515
    %v517 = vsel %vm453, %v497, 0.0
    %518 = vadd.xlane.f32.xlu0 %v517
    %v519 = vpop.xlane.xlu0 %518
    %v520 = vsel %vm453, %v499, 0.0
    %521 = vadd.xlane.f32.xlu0 %v520
    %v522 = vpop.xlane.xlu0 %521
    %v523 = vsel %vm453, %v501, 0.0
    %524 = vadd.xlane.f32.xlu0 %v523
    %v525 = vpop.xlane.xlu0 %524
    %v526 = vrcp.pop %v504
    %v527 = vrcp.pop %v507
    %v528 = vrcp.pop %v510
    %v529 = vrcp.pop %v513
    %v530 = vrcp.pop %v516
    %v531 = vrcp.pop %v519
    %v532 = vrcp.pop %v522
    %v533 = vrcp.pop %v525
    %v534 = vmul.f32 %v487, %v526
    %v535 = vmul.f32 %v489, %v527
    %v536 = vmul.f32 %v491, %v528
    %v537 = vmul.f32 %v493, %v529
    %v538 = vmul.f32 %v495, %v530
    %v539 = vmul.f32 %v497, %v531
    %v540 = vmul.f32 %v499, %v532
    %v541 = vmul.f32 %v501, %v533
    %v542 = vpack.c.bf16 %v535, %v534
    %v543 = vpack.c.bf16 %v537, %v536
    %v544 = vpack.c.bf16 %v539, %v538
    %v545 = vpack.c.bf16 %v541, %v540
    %550 = vrot.lane.b32.xlu0 %v364, 96
    %v551 = vpop.permute.xlu0 %550
    %552 = vrot.lane.b32.xlu0 %v365, 96
    %v553 = vpop.permute.xlu0 %552
    %554 = vrot.lane.b32.xlu0 %v366, 96
    %v555 = vpop.permute.xlu0 %554
    %556 = vrot.lane.b32.xlu0 %v367, 96
    %v557 = vpop.permute.xlu0 %556
    %v563 = vsel %vm453, %v542, 0
    %v566 = vsel %vm453, %v543, 0
    %v569 = vsel %vm453, %v544, 0
    %v572 = vsel %vm453, %v545, 0
    %574 = vmatprep.subr.bf16.mxu0 0
    %575 = vmatpush1.bf16.msra.mxu0 0
    %576 = vmatprep.subr.bf16.mxu0 0
    %577 = vmatpush1.bf16.msra.mxu0 0
    %578 = vmatprep.subr.bf16.mxu0 0
    %579 = vmatpush1.bf16.msra.mxu0 0
    %580 = vmatprep.subr.bf16.mxu0 0
    %581 = vmatpush1.bf16.msra.mxu0 0
    %582 = vmatprep.subr.bf16.mxu0 0
    %583 = vmatpush1.bf16.msra.mxu0 %v557
    %584 = vmatprep.subr.bf16.mxu0 0
    %585 = vmatpush1.bf16.msra.mxu0 %v555
    %586 = vmatprep.subr.bf16.mxu0 0
    %587 = vmatpush1.bf16.msra.mxu0 %v553
    %588 = vmatprep.subr.bf16.mxu0 0
    %589 = vmatpush1.bf16.msra.mxu0 %v551
    %590 = vmatprep.subr.bf16.mxu0 0
    %591 = vmatpush2.bf16.msra.mxu0 0
    %592 = vmatprep.subr.bf16.mxu0 0
    %593 = vmatpush2.bf16.msra.mxu0 0
    %594 = vmatprep.subr.bf16.mxu0 0
    %595 = vmatpush2.bf16.msra.mxu0 0
    %596 = vmatprep.subr.bf16.mxu0 0
    %597 = vmatpush2.bf16.msra.mxu0 0
    %598 = vmatprep.subr.bf16.mxu0 0
    %599 = vmatpush2.bf16.msra.mxu0 0
    %600 = vmatprep.subr.bf16.mxu0 0
    %601 = vmatpush2.bf16.msra.mxu0 0
    %602 = vmatprep.subr.bf16.mxu0 0
    %603 = vmatpush2.bf16.msra.mxu0 0
    %604 = vmatprep.subr.bf16.mxu0 0
    %605 = vmatpush2.bf16.msra.mxu0 0
    %606 = vmatprep.mubr.bf16.mxu0 0
    %607 = vmatmul.mubr.bf16.gmra.mxu0 %v563
    %v608 = vpop.f32.mrf.mxu0
    %v609 = vadd.f32 0.0, %v608
    %v610 = vpop.f32.mrf.mxu0
    %v611 = vpop.f32.mrf.mxu0
    %v612 = vadd.f32 0.0, %v611
    %v613 = vpop.f32.mrf.mxu0
    %614 = vmatprep.mubr.bf16.mxu0 0
    %615 = vmatmul.mubr.bf16.gmra.mxu0 %v566
    %v616 = vpop.f32.mrf.mxu0
    %v617 = vadd.f32 0.0, %v616
    %v618 = vpop.f32.mrf.mxu0
    %v619 = vpop.f32.mrf.mxu0
    %v620 = vadd.f32 0.0, %v619
    %v621 = vpop.f32.mrf.mxu0
    %622 = vmatprep.mubr.bf16.mxu0 0
    %623 = vmatmul.mubr.bf16.gmra.mxu0 %v569
    %v624 = vpop.f32.mrf.mxu0
    %v625 = vadd.f32 0.0, %v624
    %v626 = vpop.f32.mrf.mxu0
    %v627 = vpop.f32.mrf.mxu0
    %v628 = vadd.f32 0.0, %v627
    %v629 = vpop.f32.mrf.mxu0
    %630 = vmatprep.mubr.bf16.mxu0 0
    %631 = vmatmul.mubr.bf16.gmra.mxu0 %v572
    %v632 = vpop.f32.mrf.mxu0
    %v633 = vadd.f32 0.0, %v632
    %v634 = vpop.f32.mrf.mxu0
    %v635 = vpop.f32.mrf.mxu0
    %v636 = vadd.f32 0.0, %v635
    %v637 = vpop.f32.mrf.mxu0
    %638 = vdwg.mxu0
    %v639 = vadd.f32 %v228, %v609
    %v640 = vadd.f32 %v233, %v612
    %v641 = vadd.f32 %v238, %v617
    %v642 = vadd.f32 %v243, %v620
    %v643 = vadd.f32 %v248, %v625
    %v644 = vadd.f32 %v253, %v628
    %v645 = vadd.f32 %v258, %v633
    %v646 = vadd.f32 %v263, %v636
    %v647 = vpack.c.bf16 %v640, %v639
    %v648 = vpack.c.bf16 %v642, %v641
    %v649 = vpack.c.bf16 %v644, %v643
    %v650 = vpack.c.bf16 %v646, %v645
    %651 = vrot.lane.b32.xlu0 %v282, 64
    %v652 = vpop.permute.xlu0 %651
    %653 = vrot.lane.b32.xlu0 %v283, 64
    %v654 = vpop.permute.xlu0 %653
    %657 = vrot.lane.b32.xlu0 %v130, 96
    %v658 = vpop.permute.xlu0 %657
    %v661 = vsel %vm286, %v647, 0
    %v664 = vsel %vm286, %v648, 0
    %v667 = vsel %vm286, %v649, 0
    %v670 = vsel %vm286, %v650, 0
    %672 = vmatprep.subr.bf16.mxu0 0
    %673 = vmatpush1.bf16.msra.mxu0 0
    %674 = vmatprep.subr.bf16.mxu0 0
    %675 = vmatpush1.bf16.msra.mxu0 0
    %676 = vmatprep.subr.bf16.mxu0 0
    %677 = vmatpush1.bf16.msra.mxu0 0
    %678 = vmatprep.subr.bf16.mxu0 0
    %679 = vmatpush1.bf16.msra.mxu0 0
    %680 = vmatprep.subr.bf16.mxu0 0
    %681 = vmatpush1.bf16.msra.mxu0 0
    %682 = vmatprep.subr.bf16.mxu0 0
    %683 = vmatpush1.bf16.msra.mxu0 0
    %684 = vmatprep.subr.bf16.mxu0 0
    %685 = vmatpush1.bf16.msra.mxu0 %v654
    %686 = vmatprep.subr.bf16.mxu0 0
    %687 = vmatpush1.bf16.msra.mxu0 %v652
    %688 = vmatprep.subr.bf16.mxu0 0
    %689 = vmatpush2.bf16.msra.mxu0 0
    %690 = vmatprep.subr.bf16.mxu0 0
    %691 = vmatpush2.bf16.msra.mxu0 0
    %692 = vmatprep.subr.bf16.mxu0 0
    %693 = vmatpush2.bf16.msra.mxu0 0
    %694 = vmatprep.subr.bf16.mxu0 0
    %695 = vmatpush2.bf16.msra.mxu0 0
    %696 = vmatprep.subr.bf16.mxu0 0
    %697 = vmatpush2.bf16.msra.mxu0 0
    %698 = vmatprep.subr.bf16.mxu0 0
    %699 = vmatpush2.bf16.msra.mxu0 0
    %700 = vmatprep.subr.bf16.mxu0 0
    %701 = vmatpush2.bf16.msra.mxu0 0
    %702 = vmatprep.subr.bf16.mxu0 0
    %703 = vmatpush2.bf16.msra.mxu0 0
    %704 = vmatprep.mubr.bf16.mxu0 0
    %705 = vmatmul.mubr.bf16.gmra.mxu0 %v661
    %v706 = vpop.f32.mrf.mxu0
    %v707 = vadd.f32 %v658, %v706
    %v708 = vpop.f32.mrf.mxu0
    %v709 = vpop.f32.mrf.mxu0
    %v710 = vadd.f32 %v658, %v709
    %v711 = vpop.f32.mrf.mxu0
    %712 = vmatprep.mubr.bf16.mxu0 0
    %713 = vmatmul.mubr.bf16.gmra.mxu0 %v664
    %v714 = vpop.f32.mrf.mxu0
    %v715 = vadd.f32 %v658, %v714
    %v716 = vpop.f32.mrf.mxu0
    %v717 = vpop.f32.mrf.mxu0
    %v718 = vadd.f32 %v658, %v717
    %v719 = vpop.f32.mrf.mxu0
    %720 = vmatprep.mubr.bf16.mxu0 0
    %721 = vmatmul.mubr.bf16.gmra.mxu0 %v667
    %v722 = vpop.f32.mrf.mxu0
    %v723 = vadd.f32 %v658, %v722
    %v724 = vpop.f32.mrf.mxu0
    %v725 = vpop.f32.mrf.mxu0
    %v726 = vadd.f32 %v658, %v725
    %v727 = vpop.f32.mrf.mxu0
    %728 = vmatprep.mubr.bf16.mxu0 0
    %729 = vmatmul.mubr.bf16.gmra.mxu0 %v670
    %v730 = vpop.f32.mrf.mxu0
    %v731 = vadd.f32 %v658, %v730
    %v732 = vpop.f32.mrf.mxu0
    %v733 = vpop.f32.mrf.mxu0
    %v734 = vadd.f32 %v658, %v733
    %v735 = vpop.f32.mrf.mxu0
    %736 = vdwg.mxu0
    %v737 = vmax.f32 %v707, 0.0
    %v738 = vmax.f32 %v710, 0.0
    %v739 = vmax.f32 %v715, 0.0
    %v740 = vmax.f32 %v718, 0.0
    %v741 = vmax.f32 %v723, 0.0
    %v742 = vmax.f32 %v726, 0.0
    %v743 = vmax.f32 %v731, 0.0
    %v744 = vmax.f32 %v734, 0.0
    %v745 = vpack.c.bf16 %v738, %v737
    %v746 = vpack.c.bf16 %v740, %v739
    %v747 = vpack.c.bf16 %v742, %v741
    %v748 = vpack.c.bf16 %v744, %v743
    %v749 = vld [vmem:[%s3] sm:$0xf]
    %v750 = vld [vmem:[%s3 + $0x4] sm:$0xf]
    %v751 = vld [vmem:[%s3 + $0x8] sm:$0xf]
    %v752 = vld [vmem:[%s3 + $0xc] sm:$0xf]
    %v753 = vld [vmem:[%s3 + $0x10] sm:$0xf]
    %v754 = vld [vmem:[%s3 + $0x14] sm:$0xf]
    %v755 = vld [vmem:[%s3 + $0x18] sm:$0xf]
    %v756 = vld [vmem:[%s3 + $0x1c] sm:$0xf]
    %v765 = vunpack.c.l.b16 %v749
    %v766 = vunpack.c.l.b16 %v750
    %v767 = vunpack.c.l.b16 %v751
    %v768 = vunpack.c.l.b16 %v752
    %v769 = vunpack.c.l.b16 %v753
    %v770 = vunpack.c.l.b16 %v754
    %v771 = vunpack.c.l.b16 %v755
    %v772 = vunpack.c.l.b16 %v756
    %v773 = vpack.c.b16 %v766, %v765
    %v774 = vpack.c.b16 %v768, %v767
    %v775 = vpack.c.b16 %v770, %v769
    %v776 = vpack.c.b16 %v772, %v771
    %v782 = vsel %vm453, %v745, 0
    %v785 = vsel %vm453, %v746, 0
    %v788 = vsel %vm453, %v747, 0
    %v791 = vsel %vm453, %v748, 0
    %793 = vmatprep.subr.bf16.mxu0 0
    %794 = vmatpush1.bf16.msra.mxu0 0
    %795 = vmatprep.subr.bf16.mxu0 0
    %796 = vmatpush1.bf16.msra.mxu0 0
    %797 = vmatprep.subr.bf16.mxu0 0
    %798 = vmatpush1.bf16.msra.mxu0 0
    %799 = vmatprep.subr.bf16.mxu0 0
    %800 = vmatpush1.bf16.msra.mxu0 0
    %801 = vmatprep.subr.bf16.mxu0 0
    %802 = vmatpush1.bf16.msra.mxu0 %v776
    %803 = vmatprep.subr.bf16.mxu0 0
    %804 = vmatpush1.bf16.msra.mxu0 %v775
    %805 = vmatprep.subr.bf16.mxu0 0
    %806 = vmatpush1.bf16.msra.mxu0 %v774
    %807 = vmatprep.subr.bf16.mxu0 0
    %808 = vmatpush1.bf16.msra.mxu0 %v773
    %809 = vmatprep.subr.bf16.mxu0 0
    %810 = vmatpush2.bf16.msra.mxu0 0
    %811 = vmatprep.subr.bf16.mxu0 0
    %812 = vmatpush2.bf16.msra.mxu0 0
    %813 = vmatprep.subr.bf16.mxu0 0
    %814 = vmatpush2.bf16.msra.mxu0 0
    %815 = vmatprep.subr.bf16.mxu0 0
    %816 = vmatpush2.bf16.msra.mxu0 0
    %817 = vmatprep.subr.bf16.mxu0 0
    %818 = vmatpush2.bf16.msra.mxu0 0
    %819 = vmatprep.subr.bf16.mxu0 0
    %820 = vmatpush2.bf16.msra.mxu0 0
    %821 = vmatprep.subr.bf16.mxu0 0
    %822 = vmatpush2.bf16.msra.mxu0 0
    %823 = vmatprep.subr.bf16.mxu0 0
    %824 = vmatpush2.bf16.msra.mxu0 0
    %825 = vmatprep.mubr.bf16.mxu0 0
    %826 = vmatmul.mubr.bf16.gmra.mxu0 %v782
    %v827 = vpop.f32.mrf.mxu0
    %v828 = vadd.f32 0.0, %v827
    %v829 = vpop.f32.mrf.mxu0
    %v830 = vpop.f32.mrf.mxu0
    %v831 = vadd.f32 0.0, %v830
    %v832 = vpop.f32.mrf.mxu0
    %833 = vmatprep.mubr.bf16.mxu0 0
    %834 = vmatmul.mubr.bf16.gmra.mxu0 %v785
    %v835 = vpop.f32.mrf.mxu0
    %v836 = vadd.f32 0.0, %v835
    %v837 = vpop.f32.mrf.mxu0
    %v838 = vpop.f32.mrf.mxu0
    %v839 = vadd.f32 0.0, %v838
    %v840 = vpop.f32.mrf.mxu0
    %841 = vmatprep.mubr.bf16.mxu0 0
    %842 = vmatmul.mubr.bf16.gmra.mxu0 %v788
    %v843 = vpop.f32.mrf.mxu0
    %v844 = vadd.f32 0.0, %v843
    %v845 = vpop.f32.mrf.mxu0
    %v846 = vpop.f32.mrf.mxu0
    %v847 = vadd.f32 0.0, %v846
    %v848 = vpop.f32.mrf.mxu0
    %849 = vmatprep.mubr.bf16.mxu0 0
    %850 = vmatmul.mubr.bf16.gmra.mxu0 %v791
    %v851 = vpop.f32.mrf.mxu0
    %v852 = vadd.f32 0.0, %v851
    %v853 = vpop.f32.mrf.mxu0
    %v854 = vpop.f32.mrf.mxu0
    %v855 = vadd.f32 0.0, %v854
    %v856 = vpop.f32.mrf.mxu0
    %857 = vdwg.mxu0
    %v858 = vadd.f32 %v639, %v828
    %v859 = vadd.f32 %v640, %v831
    %v860 = vadd.f32 %v641, %v836
    %v861 = vadd.f32 %v642, %v839
    %v862 = vadd.f32 %v643, %v844
    %v863 = vadd.f32 %v644, %v847
    %v864 = vadd.f32 %v645, %v852
    %v865 = vadd.f32 %v646, %v855
    %866 = vrot.lane.b32.xlu0 %v130, 32
    %v867 = vpop.permute.xlu0 %866
    %v869 = vadd.f32 %v858, %v867
    %v870 = vadd.f32 %v859, %v867
    %v871 = vadd.f32 %v860, %v867
    %v872 = vadd.f32 %v861, %v867
    %v873 = vadd.f32 %v862, %v867
    %v874 = vadd.f32 %v863, %v867
    %v875 = vadd.f32 %v864, %v867
    %v876 = vadd.f32 %v865, %v867
    %v877 = vld [vmem:[#allocation8] sm:$0xf]
    %v878 = vld [vmem:[#allocation8 + $0x4] sm:$0xf]
    %v879 = vpack.c.bf16 %v870, %v869
    %v880 = vpack.c.bf16 %v872, %v871
    %v881 = vpack.c.bf16 %v874, %v873
    %v882 = vpack.c.bf16 %v876, %v875
    %v885 = vunpack.c.l.b16 %v877
    %v886 = vunpack.c.l.b16 %v878
    %v887 = vpack.c.b16 %v886, %v885
    %v889 = vsel %vm453, %v887, 0
    %891 = vmatprep.subr.bf16.mxu0 0
    %892 = vmatpush1.bf16.msra.mxu0 0
    %893 = vmatprep.subr.bf16.mxu0 0
    %894 = vmatpush1.bf16.msra.mxu0 0
    %895 = vmatprep.subr.bf16.mxu0 0
    %896 = vmatpush1.bf16.msra.mxu0 0
    %897 = vmatprep.subr.bf16.mxu0 0
    %898 = vmatpush1.bf16.msra.mxu0 0
    %899 = vmatprep.subr.bf16.mxu0 0
    %900 = vmatpush1.bf16.msra.mxu0 %v882
    %901 = vmatprep.subr.bf16.mxu0 0
    %902 = vmatpush1.bf16.msra.mxu0 %v881
    %903 = vmatprep.subr.bf16.mxu0 0
    %904 = vmatpush1.bf16.msra.mxu0 %v880
    %905 = vmatprep.subr.bf16.mxu0 0
    %906 = vmatpush1.bf16.msra.mxu0 %v879
    %907 = vmatprep.subr.bf16.mxu0 0
    %908 = vmatpush2.bf16.msra.mxu0 0
    %909 = vmatprep.subr.bf16.mxu0 0
    %910 = vmatpush2.bf16.msra.mxu0 0
    %911 = vmatprep.subr.bf16.mxu0 0
    %912 = vmatpush2.bf16.msra.mxu0 0
    %913 = vmatprep.subr.bf16.mxu0 0
    %914 = vmatpush2.bf16.msra.mxu0 0
    %915 = vmatprep.subr.bf16.mxu0 0
    %916 = vmatpush2.bf16.msra.mxu0 0
    %917 = vmatprep.subr.bf16.mxu0 0
    %918 = vmatpush2.bf16.msra.mxu0 0
    %919 = vmatprep.subr.bf16.mxu0 0
    %920 = vmatpush2.bf16.msra.mxu0 0
    %921 = vmatprep.subr.bf16.mxu0 0
    %922 = vmatpush2.bf16.msra.mxu0 0
    %923 = vmatprep.mubr.bf16.mxu0 0
    %924 = vmatmul.mubr.bf16.gmra.mxu0 %v889
    %v925 = vpop.f32.mrf.mxu0
    %v926 = vadd.f32 0.0, %v925
    %v927 = vpop.f32.mrf.mxu0
    %v928 = vpop.f32.mrf.mxu0
    %v929 = vadd.f32 0.0, %v928
    %v930 = vpop.f32.mrf.mxu0
    %931 = vdwg.mxu0
    %v932 = vpack.c.bf16 %v929, %v926
    %v933 = vld [vmem:[#allocation5 + $0x4] sm:$0xf]
    %v934 = vld [vmem:[#allocation5 + $0xc] sm:$0xf]
    %v935 = vld [vmem:[#allocation5 + $0x14] sm:$0xf]
    %v936 = vld [vmem:[#allocation5 + $0x1c] sm:$0xf]
    %v938 = vlaneseq
    %v939 = vshrl.u32 %v938, 7
    %v940 = vsub.s32 0, %v939
    %v941 = vrot.slane %v124, %v940
    %v947 = vunpack.c.l.b16 %v933
    %v948 = vunpack.c.l.b16 %v934
    %v949 = vunpack.c.l.b16 %v935
    %v950 = vunpack.c.l.b16 %v936
    %v951 = vpack.c.b16 %v948, %v947
    %v952 = vpack.c.b16 %v950, %v949
    %v956 = vsel %vm286, %v932, 0
    %958 = vmatprep.subr.bf16.mxu0 0
    %959 = vmatpush1.bf16.msra.mxu0 0
    %960 = vmatprep.subr.bf16.mxu0 0
    %961 = vmatpush1.bf16.msra.mxu0 0
    %962 = vmatprep.subr.bf16.mxu0 0
    %963 = vmatpush1.bf16.msra.mxu0 0
    %964 = vmatprep.subr.bf16.mxu0 0
    %965 = vmatpush1.bf16.msra.mxu0 0
    %966 = vmatprep.subr.bf16.mxu0 0
    %967 = vmatpush1.bf16.msra.mxu0 0
    %968 = vmatprep.subr.bf16.mxu0 0
    %969 = vmatpush1.bf16.msra.mxu0 0
    %970 = vmatprep.subr.bf16.mxu0 0
    %971 = vmatpush1.bf16.msra.mxu0 %v952
    %972 = vmatprep.subr.bf16.mxu0 0
    %973 = vmatpush1.bf16.msra.mxu0 %v951
    %974 = vmatprep.subr.bf16.mxu0 0
    %975 = vmatpush2.bf16.msra.mxu0 0
    %976 = vmatprep.subr.bf16.mxu0 0
    %977 = vmatpush2.bf16.msra.mxu0 0
    %978 = vmatprep.subr.bf16.mxu0 0
    %979 = vmatpush2.bf16.msra.mxu0 0
    %980 = vmatprep.subr.bf16.mxu0 0
    %981 = vmatpush2.bf16.msra.mxu0 0
    %982 = vmatprep.subr.bf16.mxu0 0
    %983 = vmatpush2.bf16.msra.mxu0 0
    %984 = vmatprep.subr.bf16.mxu0 0
    %985 = vmatpush2.bf16.msra.mxu0 0
    %986 = vmatprep.subr.bf16.mxu0 0
    %987 = vmatpush2.bf16.msra.mxu0 0
    %988 = vmatprep.subr.bf16.mxu0 0
    %989 = vmatpush2.bf16.msra.mxu0 0
    %990 = vmatprep.mubr.bf16.mxu0 0
    %991 = vmatmul.mubr.bf16.gmra.mxu0 %v956
    %v992 = vpop.f32.mrf.mxu0
    %v993 = vadd.f32 %v941, %v992
    %v994 = vpop.f32.mrf.mxu0
    %v995 = vpop.f32.mrf.mxu0
    %v996 = vadd.f32 %v941, %v995
    %v997 = vpop.f32.mrf.mxu0
    %998 = vdwg.mxu0
    %v999 = vpack.c.bf16 %v996, %v993
    %v1000 = vld [vmem:[#allocation11] sm:$0xff]
    %v1001 = vld [vmem:[#allocation11 + $0x8] sm:$0xff]
    %v1002 = vld [vmem:[#allocation11 + $0x10] sm:$0xff]
    %v1003 = vld [vmem:[#allocation11 + $0x18] sm:$0xff]
    %v1004 = vld [vmem:[#allocation11 + $0x20] sm:$0xff]
    %v1005 = vld [vmem:[#allocation11 + $0x28] sm:$0xff]
    %v1006 = vld [vmem:[#allocation11 + $0x30] sm:$0xff]
    %v1007 = vld [vmem:[#allocation11 + $0x38] sm:$0xff]
    %v1008 = vld [vmem:[#allocation11 + $0x40] sm:$0xff]
    %v1009 = vld [vmem:[#allocation11 + $0x48] sm:$0xff]
    %v1010 = vld [vmem:[#allocation11 + $0x50] sm:$0xff]
    %v1011 = vld [vmem:[#allocation11 + $0x58] sm:$0xff]
    %v1012 = vld [vmem:[#allocation11 + $0x60] sm:$0xff]
    %v1013 = vld [vmem:[#allocation11 + $0x68] sm:$0xff]
    %v1014 = vld [vmem:[#allocation11 + $0x70] sm:$0xff]
    %v1015 = vld [vmem:[#allocation11 + $0x78] sm:$0xff]
    %v1032 = vunpack.c.l.b16 %v1000
    %v1033 = vunpack.c.h.b16 %v1000
    %v1034 = vunpack.c.l.b16 %v1001
    %v1035 = vunpack.c.h.b16 %v1001
    %v1036 = vunpack.c.l.b16 %v1002
    %v1037 = vunpack.c.h.b16 %v1002
    %v1038 = vunpack.c.l.b16 %v1003
    %v1039 = vunpack.c.h.b16 %v1003
    %v1040 = vunpack.c.l.b16 %v1004
    %v1041 = vunpack.c.h.b16 %v1004
    %v1042 = vunpack.c.l.b16 %v1005
    %v1043 = vunpack.c.h.b16 %v1005
    %v1044 = vunpack.c.l.b16 %v1006
    %v1045 = vunpack.c.h.b16 %v1006
    %v1046 = vunpack.c.l.b16 %v1007
    %v1047 = vunpack.c.h.b16 %v1007
    %v1048 = vunpack.c.l.b16 %v1008
    %v1049 = vunpack.c.h.b16 %v1008
    %v1050 = vunpack.c.l.b16 %v1009
    %v1051 = vunpack.c.h.b16 %v1009
    %v1052 = vunpack.c.l.b16 %v1010
    %v1053 = vunpack.c.h.b16 %v1010
    %v1054 = vunpack.c.l.b16 %v1011
    %v1055 = vunpack.c.h.b16 %v1011
    %v1056 = vunpack.c.l.b16 %v1012
    %v1057 = vunpack.c.h.b16 %v1012
    %v1058 = vunpack.c.l.b16 %v1013
    %v1059 = vunpack.c.h.b16 %v1013
    %v1060 = vunpack.c.l.b16 %v1014
    %v1061 = vunpack.c.h.b16 %v1014
    %v1062 = vunpack.c.l.b16 %v1015
    %v1063 = vunpack.c.h.b16 %v1015
    %v1064 = vpack.c.b16 %v1040, %v1032
    %v1065 = vpack.c.b16 %v1041, %v1033
    %v1066 = vpack.c.b16 %v1042, %v1034
    %v1067 = vpack.c.b16 %v1043, %v1035
    %v1068 = vpack.c.b16 %v1044, %v1036
    %v1069 = vpack.c.b16 %v1045, %v1037
    %v1070 = vpack.c.b16 %v1046, %v1038
    %v1071 = vpack.c.b16 %v1047, %v1039
    %v1072 = vpack.c.b16 %v1056, %v1048
    %v1073 = vpack.c.b16 %v1057, %v1049
    %v1074 = vpack.c.b16 %v1058, %v1050
    %v1075 = vpack.c.b16 %v1059, %v1051
    %v1076 = vpack.c.b16 %v1060, %v1052
    %v1077 = vpack.c.b16 %v1061, %v1053
    %v1078 = vpack.c.b16 %v1062, %v1054
    %v1079 = vpack.c.b16 %v1063, %v1055
    %v1097 = vsel %vm286, %v999, 0
    %1099 = vmatprep.subr.bf16.mxu0 0
    %1100 = vmatpush1.bf16.msra.mxu0 0
    %1101 = vmatprep.subr.bf16.mxu0 0
    %1102 = vmatpush1.bf16.msra.mxu0 0
    %1103 = vmatprep.subr.bf16.mxu0 0
    %1104 = vmatpush1.bf16.msra.mxu0 0
    %1105 = vmatprep.subr.bf16.mxu0 0
    %1106 = vmatpush1.bf16.msra.mxu0 0
    %1107 = vmatprep.subr.bf16.mxu0 0
    %1108 = vmatpush1.bf16.msra.mxu0 0
    %1109 = vmatprep.subr.bf16.mxu0 0
    %1110 = vmatpush1.bf16.msra.mxu0 0
    %1111 = vmatprep.subr.bf16.mxu0 %v1073
    %1112 = vmatpush1.bf16.msra.mxu0 %v1072
    %1113 = vmatprep.subr.bf16.mxu0 %v1065
    %1114 = vmatpush1.bf16.msra.mxu0 %v1064
    %1115 = vmatprep.subr.bf16.mxu0 0
    %1116 = vmatpush2.bf16.msra.mxu0 0
    %1117 = vmatprep.subr.bf16.mxu0 0
    %1118 = vmatpush2.bf16.msra.mxu0 0
    %1119 = vmatprep.subr.bf16.mxu0 0
    %1120 = vmatpush2.bf16.msra.mxu0 0
    %1121 = vmatprep.subr.bf16.mxu0 0
    %1122 = vmatpush2.bf16.msra.mxu0 0
    %1123 = vmatprep.subr.bf16.mxu0 0
    %1124 = vmatpush2.bf16.msra.mxu0 0
    %1125 = vmatprep.subr.bf16.mxu0 0
    %1126 = vmatpush2.bf16.msra.mxu0 0
    %1127 = vmatprep.subr.bf16.mxu0 0
    %1128 = vmatpush2.bf16.msra.mxu0 0
    %1129 = vmatprep.subr.bf16.mxu0 0
    %1130 = vmatpush2.bf16.msra.mxu0 0
    %1131 = vmatprep.mubr.bf16.mxu0 0
    %1132 = vmatmul.mubr.bf16.gmra.mxu0 %v1097
    %v1133 = vpop.f32.mrf.mxu0
    %v1134 = vadd.f32 0.0, %v1133
    %v1135 = vpop.f32.mrf.mxu0
    %v1136 = vadd.f32 0.0, %v1135
    %v1137 = vpop.f32.mrf.mxu0
    %v1138 = vadd.f32 0.0, %v1137
    %v1139 = vpop.f32.mrf.mxu0
    %v1140 = vadd.f32 0.0, %v1139
    %1141 = vdwg.mxu0
    %1142 = vmatprep.subr.bf16.mxu0 0
    %1143 = vmatpush1.bf16.msra.mxu0 0
    %1144 = vmatprep.subr.bf16.mxu0 0
    %1145 = vmatpush1.bf16.msra.mxu0 0
    %1146 = vmatprep.subr.bf16.mxu0 0
    %1147 = vmatpush1.bf16.msra.mxu0 0
    %1148 = vmatprep.subr.bf16.mxu0 0
    %1149 = vmatpush1.bf16.msra.mxu0 0
    %1150 = vmatprep.subr.bf16.mxu0 0
    %1151 = vmatpush1.bf16.msra.mxu0 0
    %1152 = vmatprep.subr.bf16.mxu0 0
    %1153 = vmatpush1.bf16.msra.mxu0 0
    %1154 = vmatprep.subr.bf16.mxu0 %v1075
    %1155 = vmatpush1.bf16.msra.mxu0 %v1074
    %1156 = vmatprep.subr.bf16.mxu0 %v1067
    %1157 = vmatpush1.bf16.msra.mxu0 %v1066
    %1158 = vmatprep.subr.bf16.mxu0 0
    %1159 = vmatpush2.bf16.msra.mxu0 0
    %1160 = vmatprep.subr.bf16.mxu0 0
    %1161 = vmatpush2.bf16.msra.mxu0 0
    %1162 = vmatprep.subr.bf16.mxu0 0
    %1163 = vmatpush2.bf16.msra.mxu0 0
    %1164 = vmatprep.subr.bf16.mxu0 0
    %1165 = vmatpush2.bf16.msra.mxu0 0
    %1166 = vmatprep.subr.bf16.mxu0 0
    %1167 = vmatpush2.bf16.msra.mxu0 0
    %1168 = vmatprep.subr.bf16.mxu0 0
    %1169 = vmatpush2.bf16.msra.mxu0 0
    %1170 = vmatprep.subr.bf16.mxu0 0
    %1171 = vmatpush2.bf16.msra.mxu0 0
    %1172 = vmatprep.subr.bf16.mxu0 0
    %1173 = vmatpush2.bf16.msra.mxu0 0
    %1174 = vmatprep.mubr.bf16.mxu0 0
    %1175 = vmatmul.mubr.bf16.gmra.mxu0 %v1097
    %v1176 = vpop.f32.mrf.mxu0
    %v1177 = vadd.f32 0.0, %v1176
    %v1178 = vpop.f32.mrf.mxu0
    %v1179 = vadd.f32 0.0, %v1178
    %v1180 = vpop.f32.mrf.mxu0
    %v1181 = vadd.f32 0.0, %v1180
    %v1182 = vpop.f32.mrf.mxu0
    %v1183 = vadd.f32 0.0, %v1182
    %1184 = vdwg.mxu0
    %1185 = vmatprep.subr.bf16.mxu0 0
    %1186 = vmatpush1.bf16.msra.mxu0 0
    %1187 = vmatprep.subr.bf16.mxu0 0
    %1188 = vmatpush1.bf16.msra.mxu0 0
    %1189 = vmatprep.subr.bf16.mxu0 0
    %1190 = vmatpush1.bf16.msra.mxu0 0
    %1191 = vmatprep.subr.bf16.mxu0 0
    %1192 = vmatpush1.bf16.msra.mxu0 0
    %1193 = vmatprep.subr.bf16.mxu0 0
    %1194 = vmatpush1.bf16.msra.mxu0 0
    %1195 = vmatprep.subr.bf16.mxu0 0
    %1196 = vmatpush1.bf16.msra.mxu0 0
    %1197 = vmatprep.subr.bf16.mxu0 %v1077
    %1198 = vmatpush1.bf16.msra.mxu0 %v1076
    %1199 = vmatprep.subr.bf16.mxu0 %v1069
    %1200 = vmatpush1.bf16.msra.mxu0 %v1068
    %1201 = vmatprep.subr.bf16.mxu0 0
    %1202 = vmatpush2.bf16.msra.mxu0 0
    %1203 = vmatprep.subr.bf16.mxu0 0
    %1204 = vmatpush2.bf16.msra.mxu0 0
    %1205 = vmatprep.subr.bf16.mxu0 0
    %1206 = vmatpush2.bf16.msra.mxu0 0
    %1207 = vmatprep.subr.bf16.mxu0 0
    %1208 = vmatpush2.bf16.msra.mxu0 0
    %1209 = vmatprep.subr.bf16.mxu0 0
    %1210 = vmatpush2.bf16.msra.mxu0 0
    %1211 = vmatprep.subr.bf16.mxu0 0
    %1212 = vmatpush2.bf16.msra.mxu0 0
    %1213 = vmatprep.subr.bf16.mxu0 0
    %1214 = vmatpush2.bf16.msra.mxu0 0
    %1215 = vmatprep.subr.bf16.mxu0 0
    %1216 = vmatpush2.bf16.msra.mxu0 0
    %1217 = vmatprep.mubr.bf16.mxu0 0
    %1218 = vmatmul.mubr.bf16.gmra.mxu0 %v1097
    %v1219 = vpop.f32.mrf.mxu0
    %v1220 = vadd.f32 0.0, %v1219
    %v1221 = vpop.f32.mrf.mxu0
    %v1222 = vadd.f32 0.0, %v1221
    %v1223 = vpop.f32.mrf.mxu0
    %v1224 = vadd.f32 0.0, %v1223
    %v1225 = vpop.f32.mrf.mxu0
    %v1226 = vadd.f32 0.0, %v1225
    %1227 = vdwg.mxu0
    %1228 = vmatprep.subr.bf16.mxu0 0
    %1229 = vmatpush1.bf16.msra.mxu0 0
    %1230 = vmatprep.subr.bf16.mxu0 0
    %1231 = vmatpush1.bf16.msra.mxu0 0
    %1232 = vmatprep.subr.bf16.mxu0 0
    %1233 = vmatpush1.bf16.msra.mxu0 0
    %1234 = vmatprep.subr.bf16.mxu0 0
    %1235 = vmatpush1.bf16.msra.mxu0 0
    %1236 = vmatprep.subr.bf16.mxu0 0
    %1237 = vmatpush1.bf16.msra.mxu0 0
    %1238 = vmatprep.subr.bf16.mxu0 0
    %1239 = vmatpush1.bf16.msra.mxu0 0
    %1240 = vmatprep.subr.bf16.mxu0 %v1079
    %1241 = vmatpush1.bf16.msra.mxu0 %v1078
    %1242 = vmatprep.subr.bf16.mxu0 %v1071
    %1243 = vmatpush1.bf16.msra.mxu0 %v1070
    %1244 = vmatprep.subr.bf16.mxu0 0
    %1245 = vmatpush2.bf16.msra.mxu0 0
    %1246 = vmatprep.subr.bf16.mxu0 0
    %1247 = vmatpush2.bf16.msra.mxu0 0
    %1248 = vmatprep.subr.bf16.mxu0 0
    %1249 = vmatpush2.bf16.msra.mxu0 0
    %1250 = vmatprep.subr.bf16.mxu0 0
    %1251 = vmatpush2.bf16.msra.mxu0 0
    %1252 = vmatprep.subr.bf16.mxu0 0
    %1253 = vmatpush2.bf16.msra.mxu0 0
    %1254 = vmatprep.subr.bf16.mxu0 0
    %1255 = vmatpush2.bf16.msra.mxu0 0
    %1256 = vmatprep.subr.bf16.mxu0 0
    %1257 = vmatpush2.bf16.msra.mxu0 0
    %1258 = vmatprep.subr.bf16.mxu0 0
    %1259 = vmatpush2.bf16.msra.mxu0 0
    %1260 = vmatprep.mubr.bf16.mxu0 0
    %1261 = vmatmul.mubr.bf16.gmra.mxu0 %v1097
    %v1262 = vpop.f32.mrf.mxu0
    %v1263 = vadd.f32 0.0, %v1262
    %v1264 = vpop.f32.mrf.mxu0
    %v1265 = vadd.f32 0.0, %v1264
    %v1266 = vpop.f32.mrf.mxu0
    %v1267 = vadd.f32 0.0, %v1266
    %v1268 = vpop.f32.mrf.mxu0
    %v1269 = vadd.f32 0.0, %v1268
    %1270 = vdwg.mxu0
    %v1271 = vld [vmem:[%s8] sm:$0xff]
    %v1272 = vld [vmem:[%s8 + $0x8] sm:$0xff]
    %v1273 = vld [vmem:[%s8 + $0x10] sm:$0xff]
    %v1274 = vld [vmem:[%s8 + $0x18] sm:$0xff]
    %v1275 = vld [vmem:[%s8 + $0x20] sm:$0xff]
    %v1276 = vld [vmem:[%s8 + $0x28] sm:$0xff]
    %v1277 = vld [vmem:[%s8 + $0x30] sm:$0xff]
    %v1278 = vld [vmem:[%s8 + $0x38] sm:$0xff]
    %v1279 = vld [vmem:[%s8 + $0x40] sm:$0xff]
    %v1280 = vld [vmem:[%s8 + $0x48] sm:$0xff]
    %v1281 = vld [vmem:[%s8 + $0x50] sm:$0xff]
    %v1282 = vld [vmem:[%s8 + $0x58] sm:$0xff]
    %v1283 = vld [vmem:[%s8 + $0x60] sm:$0xff]
    %v1284 = vld [vmem:[%s8 + $0x68] sm:$0xff]
    %v1285 = vld [vmem:[%s8 + $0x70] sm:$0xff]
    %v1286 = vld [vmem:[%s8 + $0x78] sm:$0xff]
    %v1287 = vmul.f32 %v1134, %v1271
    %v1288 = vmul.f32 %v1136, %v1272
    %v1289 = vmul.f32 %v1177, %v1273
    %v1290 = vmul.f32 %v1179, %v1274
    %v1291 = vmul.f32 %v1220, %v1275
    %v1292 = vmul.f32 %v1222, %v1276
    %v1293 = vmul.f32 %v1263, %v1277
    %v1294 = vmul.f32 %v1265, %v1278
    %v1295 = vmul.f32 %v1138, %v1279
    %v1296 = vmul.f32 %v1140, %v1280
    %v1297 = vmul.f32 %v1181, %v1281
    %v1298 = vmul.f32 %v1183, %v1282
    %v1299 = vmul.f32 %v1224, %v1283
    %v1300 = vmul.f32 %v1226, %v1284
    %v1301 = vmul.f32 %v1267, %v1285
    %v1302 = vmul.f32 %v1269, %v1286
    %v1303 = vld [vmem:[#allocation10] sm:$0x3]
    %vm1304 = vcmask 130048
    %v1306 = vsel %vm1304, %v1303, 0
    %1308 = vmatprep.subr.mxu0 0.0
    %1309 = vmatpush1.msra.mxu0 0.0
    %1310 = vmatprep.subr.mxu0 0.0
    %1311 = vmatpush1.msra.mxu0 0.0
    %1312 = vmatprep.subr.mxu0 0.0
    %1313 = vmatpush1.msra.mxu0 0.0
    %1314 = vmatprep.subr.mxu0 0.0
    %1315 = vmatpush1.msra.mxu0 0.0
    %1316 = vmatprep.subr.mxu0 0.0
    %1317 = vmatpush1.msra.mxu0 0.0
    %1318 = vmatprep.subr.mxu0 0.0
    %1319 = vmatpush1.msra.mxu0 0.0
    %1320 = vmatprep.subr.mxu0 0.0
    %1321 = vmatpush1.msra.mxu0 0.0
    %1322 = vmatprep.subr.mxu0 0.0
    %1323 = vmatpush1.msra.mxu0 0.0
    %1324 = vmatprep.subr.mxu0 0.0
    %1325 = vmatpush1.msra.mxu0 0.0
    %1326 = vmatprep.subr.mxu0 0.0
    %1327 = vmatpush1.msra.mxu0 0.0
    %1328 = vmatprep.subr.mxu0 0.0
    %1329 = vmatpush1.msra.mxu0 0.0
    %1330 = vmatprep.subr.mxu0 0.0
    %1331 = vmatpush1.msra.mxu0 0.0
    %1332 = vmatprep.subr.mxu0 0.0
    %1333 = vmatpush1.msra.mxu0 0.0
    %1334 = vmatprep.subr.mxu0 0.0
    %1335 = vmatpush1.msra.mxu0 0.0
    %1336 = vmatprep.subr.mxu0 %v1296
    %1337 = vmatpush1.msra.mxu0 %v1295
    %1338 = vmatprep.subr.mxu0 %v1288
    %1339 = vmatpush1.msra.mxu0 %v1287
    %1340 = vmatprep.subr.mxu0 0.0
    %1341 = vmatpush2.msra.mxu0 0.0
    %1342 = vmatprep.subr.mxu0 0.0
    %1343 = vmatpush2.msra.mxu0 0.0
    %1344 = vmatprep.subr.mxu0 0.0
    %1345 = vmatpush2.msra.mxu0 0.0
    %1346 = vmatprep.subr.mxu0 0.0
    %1347 = vmatpush2.msra.mxu0 0.0
    %1348 = vmatprep.subr.mxu0 0.0
    %1349 = vmatpush2.msra.mxu0 0.0
    %1350 = vmatprep.subr.mxu0 0.0
    %1351 = vmatpush2.msra.mxu0 0.0
    %1352 = vmatprep.subr.mxu0 0.0
    %1353 = vmatpush2.msra.mxu0 0.0
    %1354 = vmatprep.subr.mxu0 0.0
    %1355 = vmatpush2.msra.mxu0 0.0
    %1356 = vmatprep.subr.mxu0 0.0
    %1357 = vmatpush2.msra.mxu0 0.0
    %1358 = vmatprep.subr.mxu0 0.0
    %1359 = vmatpush2.msra.mxu0 0.0
    %1360 = vmatprep.subr.mxu0 0.0
    %1361 = vmatpush2.msra.mxu0 0.0
    %1362 = vmatprep.subr.mxu0 0.0
    %1363 = vmatpush2.msra.mxu0 0.0
    %1364 = vmatprep.subr.mxu0 0.0
    %1365 = vmatpush2.msra.mxu0 0.0
    %1366 = vmatprep.subr.mxu0 0.0
    %1367 = vmatpush2.msra.mxu0 0.0
    %1368 = vmatprep.subr.mxu0 0.0
    %1369 = vmatpush2.msra.mxu0 0.0
    %1370 = vmatprep.subr.mxu0 0.0
    %1371 = vmatpush2.msra.mxu0 0.0
    %1372 = vmatprep.mubr.f32.mxu0 0.0
    %1373 = vmatmul.mubr.f32.gmra.mxu0 %v1306
    %v1374 = vpop.f32.mrf.mxu0
    %v1375 = vadd.f32 0.0, %v1374
    %v1376 = vpop.f32.mrf.mxu0
    %v1377 = vadd.f32 0.0, %v1376
    %1378 = vdwg.mxu0
    %1379 = vmatprep.subr.mxu0 0.0
    %1380 = vmatpush1.msra.mxu0 0.0
    %1381 = vmatprep.subr.mxu0 0.0
    %1382 = vmatpush1.msra.mxu0 0.0
    %1383 = vmatprep.subr.mxu0 0.0
    %1384 = vmatpush1.msra.mxu0 0.0
    %1385 = vmatprep.subr.mxu0 0.0
    %1386 = vmatpush1.msra.mxu0 0.0
    %1387 = vmatprep.subr.mxu0 0.0
    %1388 = vmatpush1.msra.mxu0 0.0
    %1389 = vmatprep.subr.mxu0 0.0
    %1390 = vmatpush1.msra.mxu0 0.0
    %1391 = vmatprep.subr.mxu0 0.0
    %1392 = vmatpush1.msra.mxu0 0.0
    %1393 = vmatprep.subr.mxu0 0.0
    %1394 = vmatpush1.msra.mxu0 0.0
    %1395 = vmatprep.subr.mxu0 0.0
    %1396 = vmatpush1.msra.mxu0 0.0
    %1397 = vmatprep.subr.mxu0 0.0
    %1398 = vmatpush1.msra.mxu0 0.0
    %1399 = vmatprep.subr.mxu0 0.0
    %1400 = vmatpush1.msra.mxu0 0.0
    %1401 = vmatprep.subr.mxu0 0.0
    %1402 = vmatpush1.msra.mxu0 0.0
    %1403 = vmatprep.subr.mxu0 0.0
    %1404 = vmatpush1.msra.mxu0 0.0
    %1405 = vmatprep.subr.mxu0 0.0
    %1406 = vmatpush1.msra.mxu0 0.0
    %1407 = vmatprep.subr.mxu0 %v1298
    %1408 = vmatpush1.msra.mxu0 %v1297
    %1409 = vmatprep.subr.mxu0 %v1290
    %1410 = vmatpush1.msra.mxu0 %v1289
    %1411 = vmatprep.subr.mxu0 0.0
    %1412 = vmatpush2.msra.mxu0 0.0
    %1413 = vmatprep.subr.mxu0 0.0
    %1414 = vmatpush2.msra.mxu0 0.0
    %1415 = vmatprep.subr.mxu0 0.0
    %1416 = vmatpush2.msra.mxu0 0.0
    %1417 = vmatprep.subr.mxu0 0.0
    %1418 = vmatpush2.msra.mxu0 0.0
    %1419 = vmatprep.subr.mxu0 0.0
    %1420 = vmatpush2.msra.mxu0 0.0
    %1421 = vmatprep.subr.mxu0 0.0
    %1422 = vmatpush2.msra.mxu0 0.0
    %1423 = vmatprep.subr.mxu0 0.0
    %1424 = vmatpush2.msra.mxu0 0.0
    %1425 = vmatprep.subr.mxu0 0.0
    %1426 = vmatpush2.msra.mxu0 0.0
    %1427 = vmatprep.subr.mxu0 0.0
    %1428 = vmatpush2.msra.mxu0 0.0
    %1429 = vmatprep.subr.mxu0 0.0
    %1430 = vmatpush2.msra.mxu0 0.0
    %1431 = vmatprep.subr.mxu0 0.0
    %1432 = vmatpush2.msra.mxu0 0.0
    %1433 = vmatprep.subr.mxu0 0.0
    %1434 = vmatpush2.msra.mxu0 0.0
    %1435 = vmatprep.subr.mxu0 0.0
    %1436 = vmatpush2.msra.mxu0 0.0
    %1437 = vmatprep.subr.mxu0 0.0
    %1438 = vmatpush2.msra.mxu0 0.0
    %1439 = vmatprep.subr.mxu0 0.0
    %1440 = vmatpush2.msra.mxu0 0.0
    %1441 = vmatprep.subr.mxu0 0.0
    %1442 = vmatpush2.msra.mxu0 0.0
    %1443 = vmatprep.mubr.f32.mxu0 0.0
    %1444 = vmatmul.mubr.f32.gmra.mxu0 %v1306
    %v1445 = vpop.f32.mrf.mxu0
    %v1446 = vadd.f32 0.0, %v1445
    %v1447 = vpop.f32.mrf.mxu0
    %v1448 = vadd.f32 0.0, %v1447
    %1449 = vdwg.mxu0
    %1450 = vmatprep.subr.mxu0 0.0
    %1451 = vmatpush1.msra.mxu0 0.0
    %1452 = vmatprep.subr.mxu0 0.0
    %1453 = vmatpush1.msra.mxu0 0.0
    %1454 = vmatprep.subr.mxu0 0.0
    %1455 = vmatpush1.msra.mxu0 0.0
    %1456 = vmatprep.subr.mxu0 0.0
    %1457 = vmatpush1.msra.mxu0 0.0
    %1458 = vmatprep.subr.mxu0 0.0
    %1459 = vmatpush1.msra.mxu0 0.0
    %1460 = vmatprep.subr.mxu0 0.0
    %1461 = vmatpush1.msra.mxu0 0.0
    %1462 = vmatprep.subr.mxu0 0.0
    %1463 = vmatpush1.msra.mxu0 0.0
    %1464 = vmatprep.subr.mxu0 0.0
    %1465 = vmatpush1.msra.mxu0 0.0
    %1466 = vmatprep.subr.mxu0 0.0
    %1467 = vmatpush1.msra.mxu0 0.0
    %1468 = vmatprep.subr.mxu0 0.0
    %1469 = vmatpush1.msra.mxu0 0.0
    %1470 = vmatprep.subr.mxu0 0.0
    %1471 = vmatpush1.msra.mxu0 0.0
    %1472 = vmatprep.subr.mxu0 0.0
    %1473 = vmatpush1.msra.mxu0 0.0
    %1474 = vmatprep.subr.mxu0 0.0
    %1475 = vmatpush1.msra.mxu0 0.0
    %1476 = vmatprep.subr.mxu0 0.0
    %1477 = vmatpush1.msra.mxu0 0.0
    %1478 = vmatprep.subr.mxu0 %v1300
    %1479 = vmatpush1.msra.mxu0 %v1299
    %1480 = vmatprep.subr.mxu0 %v1292
    %1481 = vmatpush1.msra.mxu0 %v1291
    %1482 = vmatprep.subr.mxu0 0.0
    %1483 = vmatpush2.msra.mxu0 0.0
    %1484 = vmatprep.subr.mxu0 0.0
    %1485 = vmatpush2.msra.mxu0 0.0
    %1486 = vmatprep.subr.mxu0 0.0
    %1487 = vmatpush2.msra.mxu0 0.0
    %1488 = vmatprep.subr.mxu0 0.0
    %1489 = vmatpush2.msra.mxu0 0.0
    %1490 = vmatprep.subr.mxu0 0.0
    %1491 = vmatpush2.msra.mxu0 0.0
    %1492 = vmatprep.subr.mxu0 0.0
    %1493 = vmatpush2.msra.mxu0 0.0
    %1494 = vmatprep.subr.mxu0 0.0
    %1495 = vmatpush2.msra.mxu0 0.0
    %1496 = vmatprep.subr.mxu0 0.0
    %1497 = vmatpush2.msra.mxu0 0.0
    %1498 = vmatprep.subr.mxu0 0.0
    %1499 = vmatpush2.msra.mxu0 0.0
    %1500 = vmatprep.subr.mxu0 0.0
    %1501 = vmatpush2.msra.mxu0 0.0
    %1502 = vmatprep.subr.mxu0 0.0
    %1503 = vmatpush2.msra.mxu0 0.0
    %1504 = vmatprep.subr.mxu0 0.0
    %1505 = vmatpush2.msra.mxu0 0.0
    %1506 = vmatprep.subr.mxu0 0.0
    %1507 = vmatpush2.msra.mxu0 0.0
    %1508 = vmatprep.subr.mxu0 0.0
    %1509 = vmatpush2.msra.mxu0 0.0
    %1510 = vmatprep.subr.mxu0 0.0
    %1511 = vmatpush2.msra.mxu0 0.0
    %1512 = vmatprep.subr.mxu0 0.0
    %1513 = vmatpush2.msra.mxu0 0.0
    %1514 = vmatprep.mubr.f32.mxu0 0.0
    %1515 = vmatmul.mubr.f32.gmra.mxu0 %v1306
    %v1516 = vpop.f32.mrf.mxu0
    %v1517 = vadd.f32 0.0, %v1516
    %v1518 = vpop.f32.mrf.mxu0
    %v1519 = vadd.f32 0.0, %v1518
    %1520 = vdwg.mxu0
    %1521 = vmatprep.subr.mxu0 0.0
    %1522 = vmatpush1.msra.mxu0 0.0
    %1523 = vmatprep.subr.mxu0 0.0
    %1524 = vmatpush1.msra.mxu0 0.0
    %1525 = vmatprep.subr.mxu0 0.0
    %1526 = vmatpush1.msra.mxu0 0.0
    %1527 = vmatprep.subr.mxu0 0.0
    %1528 = vmatpush1.msra.mxu0 0.0
    %1529 = vmatprep.subr.mxu0 0.0
    %1530 = vmatpush1.msra.mxu0 0.0
    %1531 = vmatprep.subr.mxu0 0.0
    %1532 = vmatpush1.msra.mxu0 0.0
    %1533 = vmatprep.subr.mxu0 0.0
    %1534 = vmatpush1.msra.mxu0 0.0
    %1535 = vmatprep.subr.mxu0 0.0
    %1536 = vmatpush1.msra.mxu0 0.0
    %1537 = vmatprep.subr.mxu0 0.0
    %1538 = vmatpush1.msra.mxu0 0.0
    %1539 = vmatprep.subr.mxu0 0.0
    %1540 = vmatpush1.msra.mxu0 0.0
    %1541 = vmatprep.subr.mxu0 0.0
    %1542 = vmatpush1.msra.mxu0 0.0
    %1543 = vmatprep.subr.mxu0 0.0
    %1544 = vmatpush1.msra.mxu0 0.0
    %1545 = vmatprep.subr.mxu0 0.0
    %1546 = vmatpush1.msra.mxu0 0.0
    %1547 = vmatprep.subr.mxu0 0.0
    %1548 = vmatpush1.msra.mxu0 0.0
    %1549 = vmatprep.subr.mxu0 %v1302
    %1550 = vmatpush1.msra.mxu0 %v1301
    %1551 = vmatprep.subr.mxu0 %v1294
    %1552 = vmatpush1.msra.mxu0 %v1293
    %1553 = vmatprep.subr.mxu0 0.0
    %1554 = vmatpush2.msra.mxu0 0.0
    %1555 = vmatprep.subr.mxu0 0.0
    %1556 = vmatpush2.msra.mxu0 0.0
    %1557 = vmatprep.subr.mxu0 0.0
    %1558 = vmatpush2.msra.mxu0 0.0
    %1559 = vmatprep.subr.mxu0 0.0
    %1560 = vmatpush2.msra.mxu0 0.0
    %1561 = vmatprep.subr.mxu0 0.0
    %1562 = vmatpush2.msra.mxu0 0.0
    %1563 = vmatprep.subr.mxu0 0.0
    %1564 = vmatpush2.msra.mxu0 0.0
    %1565 = vmatprep.subr.mxu0 0.0
    %1566 = vmatpush2.msra.mxu0 0.0
    %1567 = vmatprep.subr.mxu0 0.0
    %1568 = vmatpush2.msra.mxu0 0.0
    %1569 = vmatprep.subr.mxu0 0.0
    %1570 = vmatpush2.msra.mxu0 0.0
    %1571 = vmatprep.subr.mxu0 0.0
    %1572 = vmatpush2.msra.mxu0 0.0
    %1573 = vmatprep.subr.mxu0 0.0
    %1574 = vmatpush2.msra.mxu0 0.0
    %1575 = vmatprep.subr.mxu0 0.0
    %1576 = vmatpush2.msra.mxu0 0.0
    %1577 = vmatprep.subr.mxu0 0.0
    %1578 = vmatpush2.msra.mxu0 0.0
    %1579 = vmatprep.subr.mxu0 0.0
    %1580 = vmatpush2.msra.mxu0 0.0
    %1581 = vmatprep.subr.mxu0 0.0
    %1582 = vmatpush2.msra.mxu0 0.0
    %1583 = vmatprep.subr.mxu0 0.0
    %1584 = vmatpush2.msra.mxu0 0.0
    %1585 = vmatprep.mubr.f32.mxu0 0.0
    %1586 = vmatmul.mubr.f32.gmra.mxu0 %v1306
    %v1587 = vpop.f32.mrf.mxu0
    %v1588 = vadd.f32 0.0, %v1587
    %v1589 = vpop.f32.mrf.mxu0
    %v1590 = vadd.f32 0.0, %v1589
    %1591 = vdwg.mxu0
    %v1592 = vadd.f32 %v1375, %v1377
    %v1593 = vadd.f32 %v1592, %v1446
    %v1594 = vadd.f32 %v1593, %v1448
    %v1595 = vadd.f32 %v1594, %v1517
    %v1596 = vadd.f32 %v1595, %v1519
    %v1597 = vadd.f32 %v1596, %v1588
    %v1598 = vadd.f32 %v1597, %v1590
    %v1599 = vmul.f32 %v993, %v993
    %v1600 = vmul.f32 %v996, %v996
    %1601 = vmatprep.subr.mxu0 0.0
    %1602 = vmatpush1.msra.mxu0 0.0
    %1603 = vmatprep.subr.mxu0 0.0
    %1604 = vmatpush1.msra.mxu0 0.0
    %1605 = vmatprep.subr.mxu0 0.0
    %1606 = vmatpush1.msra.mxu0 0.0
    %1607 = vmatprep.subr.mxu0 0.0
    %1608 = vmatpush1.msra.mxu0 0.0
    %1609 = vmatprep.subr.mxu0 0.0
    %1610 = vmatpush1.msra.mxu0 0.0
    %1611 = vmatprep.subr.mxu0 0.0
    %1612 = vmatpush1.msra.mxu0 0.0
    %1613 = vmatprep.subr.mxu0 0.0
    %1614 = vmatpush1.msra.mxu0 0.0
    %1615 = vmatprep.subr.mxu0 0.0
    %1616 = vmatpush1.msra.mxu0 0.0
    %1617 = vmatprep.subr.mxu0 0.0
    %1618 = vmatpush1.msra.mxu0 0.0
    %1619 = vmatprep.subr.mxu0 0.0
    %1620 = vmatpush1.msra.mxu0 0.0
    %1621 = vmatprep.subr.mxu0 0.0
    %1622 = vmatpush1.msra.mxu0 0.0
    %1623 = vmatprep.subr.mxu0 0.0
    %1624 = vmatpush1.msra.mxu0 0.0
    %1625 = vmatprep.subr.mxu0 0.0
    %1626 = vmatpush1.msra.mxu0 0.0
    %1627 = vmatprep.subr.mxu0 0.0
    %1628 = vmatpush1.msra.mxu0 0.0
    %1629 = vmatprep.subr.mxu0 0.0
    %1630 = vmatpush1.msra.mxu0 %v1600
    %1631 = vmatprep.subr.mxu0 0.0
    %1632 = vmatpush1.msra.mxu0 %v1599
    %1633 = vmatprep.subr.mxu0 0.0
    %1634 = vmatpush2.msra.mxu0 0.0
    %1635 = vmatprep.subr.mxu0 0.0
    %1636 = vmatpush2.msra.mxu0 0.0
    %1637 = vmatprep.subr.mxu0 0.0
    %1638 = vmatpush2.msra.mxu0 0.0
    %1639 = vmatprep.subr.mxu0 0.0
    %1640 = vmatpush2.msra.mxu0 0.0
    %1641 = vmatprep.subr.mxu0 0.0
    %1642 = vmatpush2.msra.mxu0 0.0
    %1643 = vmatprep.subr.mxu0 0.0
    %1644 = vmatpush2.msra.mxu0 0.0
    %1645 = vmatprep.subr.mxu0 0.0
    %1646 = vmatpush2.msra.mxu0 0.0
    %1647 = vmatprep.subr.mxu0 0.0
    %1648 = vmatpush2.msra.mxu0 0.0
    %1649 = vmatprep.subr.mxu0 0.0
    %1650 = vmatpush2.msra.mxu0 0.0
    %1651 = vmatprep.subr.mxu0 0.0
    %1652 = vmatpush2.msra.mxu0 0.0
    %1653 = vmatprep.subr.mxu0 0.0
    %1654 = vmatpush2.msra.mxu0 0.0
    %1655 = vmatprep.subr.mxu0 0.0
    %1656 = vmatpush2.msra.mxu0 0.0
    %1657 = vmatprep.subr.mxu0 0.0
    %1658 = vmatpush2.msra.mxu0 0.0
    %1659 = vmatprep.subr.mxu0 0.0
    %1660 = vmatpush2.msra.mxu0 0.0
    %1661 = vmatprep.subr.mxu0 0.0
    %1662 = vmatpush2.msra.mxu0 0.0
    %1663 = vmatprep.subr.mxu0 0.0
    %1664 = vmatpush2.msra.mxu0 0.0
    %1665 = vmatprep.mubr.f32.mxu0 0.0
    %1666 = vmatmul.mubr.f32.gmra.mxu0 %v1306
    %v1667 = vpop.f32.mrf.mxu0
    %v1668 = vadd.f32 0.0, %v1667
    %v1669 = vpop.f32.mrf.mxu0
    %1670 = vdwg.mxu0
    %vm1671 = vcmask 254976
    %v1672 = vsel %vm1671, %v1668, 0.0
    %1673 = vadd.xlane.f32.xlu0 %v1672
    %v1674 = vpop.xlane.xlu0 %1673
    %v1675 = vmax.f32 %v1674, 1e-24
    %v1676 = vrsqrt.pop %v1675
    %v1677 = vmul.f32 %v1598, %v1676
    %1678 = vst [vmem:[#allocation13] sm:$0x3] %v1677
    // Predicated region
    $region66: #{tpu_custom_call.1} parent=1 // pred_check
      _
    $region67: #{tpu_custom_call.1} parent=1 // pred_check_branch
      %1680 = sbr.rel (0) target = $region69
    $region68: #{tpu_custom_call.1} parent=1 // pred_region
      %s1682 = ssub.s32 32, 32
      %1683 = vsyncadd [#allocation4], %s1682
      %s1685 = sshll.u32 [#allocation13], 4
      %s1686 = int_to_ptr.vmem [resolvable:$true] %s1685
      %1688 = dma.vmem_to_hbm [thread:$0]  %s1686, 32, %s10, [#allocation4]
    $region69: #{tpu_custom_call.1} parent=1 // pred_fallthru
      _
    // Predicated region
    $region70: #{tpu_custom_call.1} parent=1 // pred_check
      _
    $region71: #{tpu_custom_call.1} parent=1 // pred_check_branch
      %1690 = sbr.rel (0) target = $region73
    $region72: #{tpu_custom_call.1} parent=1 // pred_region
      %1691 = dma.done [#allocation4], 32
    $region73: #{tpu_custom_call.1} parent=1 // pred_fallthru
      _
    %1692 = vsyncpa [#allocation3], 1
    %1693 = vsyncpa [#allocation6], 1
    %1694 = vsyncpa [#allocation9], 1
    %1695 = vsyncpa [#allocation12], 1
    %1696 = vsyncpa [#allocation4], 1

</llo_original>
